<compile_context>
chip_gen: v5e
topology: v5e:2x2
jax: 0.10.0
libtpu: 0.0.40
codegen_flags: <defaults>
</compile_context>

<pallas_src>
import functools

import jax
import jax.numpy as jnp
import numpy as np
from jax.experimental import pallas as pl
from jax.experimental.pallas import tpu as pltpu


def _lstm_kernel(len_ref, x_ref, wih0_ref, whh0_ref, wih1_ref, whh1_ref,
                 b0_ref, b1_ref, wcls_ref, bcls_ref, out_ref,
                 h0_ref, c0_ref, h1_ref, c1_ref, *, unroll):
    """One (batch tile, time chunk) grid step.

    len_ref:  (bb, 1) int32 sequence lengths
    x_ref:    (Tc, bb, Din) bf16 time-major input chunk
    wih0_ref: (Din, 4H) bf16, whh0/wih1/whh1: (H, 4H) bf16  (gate order [i, f, o, g])
    b0/b1:    (1, 4H) f32 combined biases
    wcls_ref: (H, Cp) bf16, bcls_ref: (1, Cp) f32  (class dim padded to 128 lanes)
    out_ref:  (bb, Cp) f32
    h*/c*_ref: (bb, H) f32 VMEM scratch carrying state across time chunks
    """
    Tc, bb, _ = x_ref.shape
    H = whh0_ref.shape[0]
    chunk = pl.program_id(1)

    @pl.when(chunk == 0)
    def _():
        zeros = jnp.zeros((bb, H), jnp.float32)
        h0_ref[...] = zeros
        c0_ref[...] = zeros
        h1_ref[...] = zeros
        c1_ref[...] = zeros

    # Loop-invariant loads / broadcasts hoisted out of the serial recurrence.
    wih0 = wih0_ref[...]                                    # (Din, 4H) bf16
    whh0 = whh0_ref[...]                                    # (H, 4H)   bf16
    wih1 = wih1_ref[...]                                    # (H, 4H)   bf16
    whh1 = whh1_ref[...]                                    # (H, 4H)   bf16
    b0 = jnp.broadcast_to(b0_ref[...], (bb, 4 * H))         # broadcast once, not per step
    b1 = jnp.broadcast_to(b1_ref[...], (bb, 4 * H))
    lens = len_ref[...]                                     # (bb, 1) int32
    cdt = wih0.dtype                                        # bf16 MXU operand dtype
    t_off = chunk * Tc

    def gates_to_hc(gates, c):
        # Gate columns are [i, f, o, g]: one sigmoid launch on 3H lanes, one tanh on H
        # (half the EUP work of running both activations on the full 4H slab).
        sig = jax.nn.sigmoid(gates[:, :3 * H])
        g = jnp.tanh(gates[:, 3 * H:])
        i = sig[:, 0 * H:1 * H]
        f = sig[:, 1 * H:2 * H]
        o = sig[:, 2 * H:3 * H]
        c_new = f * c + i * g
        h_new = o * jnp.tanh(c_new)
        return h_new, c_new

    def step(t, carry):
        h0, c0, h1, c1 = carry
        valid = (t_off + t) < lens                          # (bb, 1), broadcasts over H

        # Carry-independent / previous-step pushes first, so the MXU overlaps this
        # step's EUP/VPU chain: layer-0 input projection and h1(t-1) @ whh1.
        gx = jnp.dot(x_ref[t], wih0, preferred_element_type=jnp.float32)
        g1h = jnp.dot(h1.astype(cdt), whh1, preferred_element_type=jnp.float32)

        # Layer 0.
        g0 = gx + jnp.dot(h0.astype(cdt), whh0, preferred_element_type=jnp.float32) + b0
        h0n, c0n = gates_to_hc(g0, c0)
        h0n = jnp.where(valid, h0n, h0)
        c0n = jnp.where(valid, c0n, c0)

        # Layer 1 (second half of the un-fused matmul, now that h0n exists).
        g1 = g1h + jnp.dot(h0n.astype(cdt), wih1, preferred_element_type=jnp.float32) + b1
        h1n, c1n = gates_to_hc(g1, c1)
        h1n = jnp.where(valid, h1n, h1)
        c1n = jnp.where(valid, c1n, c1)
        return (h0n, c0n, h1n, c1n)

    carry0 = (h0_ref[...], c0_ref[...], h1_ref[...], c1_ref[...])
    h0, c0, h1, c1 = jax.lax.fori_loop(0, Tc, step, carry0, unroll=unroll)
    h0_ref[...] = h0
    c0_ref[...] = c0
    h1_ref[...] = h1
    c1_ref[...] = c1

    # Classifier on hn[-1] once the last time chunk has run (lane-dense padded output).
    @pl.when(chunk == pl.num_programs(1) - 1)
    def _():
        out_ref[...] = (
            jnp.dot(h1.astype(cdt), wcls_ref[...], preferred_element_type=jnp.float32)
            + bcls_ref[...])


def _tensorcores_per_chip():
    """Only 2-TensorCore parts (v7x) benefit from a 'parallel' batch split."""
    try:
        kind = jax.devices()[0].device_kind.lower()
    except Exception:
        return 1
    return 2 if "v7" in kind else 1


def _permute_gates(w):
    """Reorder the trailing 4H gate axis from PyTorch [i, f, g, o] to [i, f, o, g]."""
    H = w.shape[-1] // 4
    return jnp.concatenate([w[..., :2 * H], w[..., 3 * H:], w[..., 2 * H:3 * H]], axis=-1)


@jax.jit
def simple_lstm_forward(x, lengths, params):
    """x: (B, T, input_size) f32, lengths: (B,) int (sorted descending)."""
    B, T, Din = x.shape
    H = params["whh0"].shape[1]
    C = params["wcls"].shape[0]
    H4 = 4 * H
    cdt = jnp.bfloat16  # MXU operand dtype; state & accumulation stay f32.

    # Pre-transposed, gate-reordered bf16 weights (params keep PyTorch layout/order).
    wih0 = _permute_gates(params["wih0"].T).astype(cdt)           # (Din, 4H)
    whh0 = _permute_gates(params["whh0"].T).astype(cdt)           # (H, 4H)
    wih1 = _permute_gates(params["wih1"].T).astype(cdt)           # (H, 4H)
    whh1 = _permute_gates(params["whh1"].T).astype(cdt)           # (H, 4H)
    b0 = _permute_gates((params["bih0"] + params["bhh0"]).reshape(1, H4)).astype(jnp.float32)
    b1 = _permute_gates((params["bih1"] + params["bhh1"]).reshape(1, H4)).astype(jnp.float32)

    # Lane-dense classifier: pad the class dim to a multiple of 128, slice back below.
    Cp = ((C + 127) // 128) * 128
    wcls = jnp.zeros((H, Cp), cdt).at[:, :C].set(params["wcls"].T.astype(cdt))
    bcls = jnp.zeros((1, Cp), jnp.float32).at[:, :C].set(params["bcls"].reshape(1, C))

    len2d = lengths.astype(jnp.int32).reshape(B, 1)

    # Batch split only on 2-TC chips and only if each half stays 8-sublane aligned.
    bb = B
    if _tensorcores_per_chip() >= 2 and B % 2 == 0 and (B // 2) % 8 == 0:
        bb = B // 2
    nb = B // bb

    # Time chunking: bounded VMEM per chunk; state carried in VMEM scratch across chunks.
    Tc = T if T <= 32 else 32
    nc = -(-T // Tc)
    T_pad = nc * Tc
    unroll = True if Tc <= 8 else 4   # full unroll only for short chunks

    # Time-major bf16 x; padded timesteps are dropped by the lengths mask anyway.
    x_tm = jnp.transpose(x.astype(cdt), (1, 0, 2))                # (T, B, Din)
    if T_pad != T:
        x_tm = jnp.pad(x_tm, ((0, T_pad - T), (0, 0), (0, 0)))

    const = lambda shape: pl.BlockSpec(shape, lambda b, tc: (0,) * len(shape))

    out = pl.pallas_call(
        functools.partial(_lstm_kernel, unroll=unroll),
        out_shape=jax.ShapeDtypeStruct((B, Cp), jnp.float32),
        grid=(nb, nc),
        in_specs=[
            pl.BlockSpec((bb, 1), lambda b, tc: (b, 0)),            # lengths
            pl.BlockSpec((Tc, bb, Din), lambda b, tc: (tc, b, 0)),  # x (time-major chunk)
            const((Din, H4)),                                       # wih0
            const((H, H4)),                                         # whh0
            const((H, H4)),                                         # wih1
            const((H, H4)),                                         # whh1
            const((1, H4)),                                         # b0
            const((1, H4)),                                         # b1
            const((H, Cp)),                                         # wcls (padded)
            const((1, Cp)),                                         # bcls (padded)
        ],
        out_specs=pl.BlockSpec((bb, Cp), lambda b, tc: (b, 0)),
        scratch_shapes=[pltpu.VMEM((bb, H), jnp.float32)] * 4,      # h0, c0, h1, c1
        compiler_params=pltpu.CompilerParams(
            dimension_semantics=("parallel", "arbitrary")),
    )(len2d, x_tm, wih0, whh0, wih1, whh1, b0, b1, wcls, bcls)
    return out[:, :C]


def _reference_forward(x, lengths, params):
    """Pure-JAX f32 reference implementing the same packed-LSTM semantics."""
    B, T, Din = x.shape
    H = params["whh0"].shape[1]

    def cell(xt, h, c, wih, whh, bih, bhh):
        gates = xt @ wih.T + h @ whh.T + bih + bhh
        i = jax.nn.sigmoid(gates[:, 0 * H:1 * H])
        f = jax.nn.sigmoid(gates[:, 1 * H:2 * H])
        g = jnp.tanh(gates[:, 2 * H:3 * H])
        o = jax.nn.sigmoid(gates[:, 3 * H:4 * H])
        c_new = f * c + i * g
        h_new = o * jnp.tanh(c_new)
        return h_new, c_new

    h0 = jnp.zeros((B, H)); c0 = jnp.zeros((B, H))
    h1 = jnp.zeros((B, H)); c1 = jnp.zeros((B, H))
    for t in range(T):
        valid = (t < lengths).reshape(B, 1)
        xt = x[:, t, :]
        h0n, c0n = cell(xt, h0, c0, params["wih0"], params["whh0"],
                        params["bih0"], params["bhh0"])
        h0 = jnp.where(valid, h0n, h0); c0 = jnp.where(valid, c0n, c0)
        h1n, c1n = cell(h0, h1, c1, params["wih1"], params["whh1"],
                        params["bih1"], params["bhh1"])
        h1 = jnp.where(valid, h1n, h1); c1 = jnp.where(valid, c1n, c1)
    return h1 @ params["wcls"].T + params["bcls"]


def init_params(key, input_size, hidden_size, num_classes):
    """Deterministic synthetic init, PyTorch-style U(-1/sqrt(H), 1/sqrt(H))."""
    H = hidden_size
    k = 1.0 / np.sqrt(H)
    keys = jax.random.split(key, 11)
    u = lambda kk, shape: jax.random.uniform(kk, shape, jnp.float32, -k, k)
    return {
        "wih0": u(keys[0], (4 * H, input_size)),
        "whh0": u(keys[1], (4 * H, H)),
        "bih0": u(keys[2], (4 * H,)),
        "bhh0": u(keys[3], (4 * H,)),
        "wih1": u(keys[4], (4 * H, H)),
        "whh1": u(keys[5], (4 * H, H)),
        "bih1": u(keys[6], (4 * H,)),
        "bhh1": u(keys[7], (4 * H,)),
        "wcls": u(keys[8], (num_classes, H)),
        "bcls": u(keys[9], (num_classes,)),
    }


if __name__ == "__main__":
    B, T, INPUT, HIDDEN, CLASSES = 2, 8, 16, 32, 8

    key = jax.random.PRNGKey(0)
    kx, kp = jax.random.split(key)
    x = jax.random.normal(kx, (B, T, INPUT), jnp.float32)
    lengths = jnp.array([8, 5], dtype=jnp.int32)  # sorted descending (enforce_sorted=True)
    params = init_params(kp, INPUT, HIDDEN, CLASSES)

    out = simple_lstm_forward(x, lengths, params)
    out = jax.block_until_ready(out)

    ref = _reference_forward(x, lengths, params)
    # Tolerance reflects bf16 matmul operands (f32 accumulation/state) vs the f32 reference.
    np.testing.assert_allclose(np.asarray(out), np.asarray(ref), rtol=5e-2, atol=5e-2)

    assert out.shape == (B, CLASSES)
    print("KERNEL_OK")
</pallas_src>

<mosaic_0001>
module attributes {stable_mosaic.version = 11 : i64} {
  func.func @_lstm_kernel(%arg0: i32, %arg1: i32, %arg2: memref<2x1xi32, #tpu.memory_space<vmem>>, %arg3: memref<8x2x16xbf16, #tpu.memory_space<vmem>>, %arg4: memref<16x128xbf16, #tpu.memory_space<vmem>>, %arg5: memref<32x128xbf16, #tpu.memory_space<vmem>>, %arg6: memref<32x128xbf16, #tpu.memory_space<vmem>>, %arg7: memref<32x128xbf16, #tpu.memory_space<vmem>>, %arg8: memref<1x128xf32, #tpu.memory_space<vmem>>, %arg9: memref<1x128xf32, #tpu.memory_space<vmem>>, %arg10: memref<32x128xbf16, #tpu.memory_space<vmem>>, %arg11: memref<1x128xf32, #tpu.memory_space<vmem>>, %arg12: memref<2x128xf32, #tpu.memory_space<vmem>>, %arg13: memref<2x32xf32, #tpu.memory_space<vmem>>, %arg14: memref<2x32xf32, #tpu.memory_space<vmem>>, %arg15: memref<2x32xf32, #tpu.memory_space<vmem>>, %arg16: memref<2x32xf32, #tpu.memory_space<vmem>>) attributes {dimension_semantics = [#tpu.dimension_semantics<parallel>, #tpu.dimension_semantics<arbitrary>], iteration_bounds = array<i64: 1, 1>, scalar_prefetch = 0 : i64, scratch_operands = 4 : i64, tpu.core_type = #tpu.core_type<tc>, window_params = [{transform_indices = @transform_0, window_bounds = array<i64: 2, 1>}, {transform_indices = @transform_1, window_bounds = array<i64: 8, 2, 16>}, {pipeline_mode = #tpu.pipeline_mode<synchronous>, transform_indices = @transform_2, window_bounds = array<i64: 16, 128>}, {pipeline_mode = #tpu.pipeline_mode<synchronous>, transform_indices = @transform_3, window_bounds = array<i64: 32, 128>}, {pipeline_mode = #tpu.pipeline_mode<synchronous>, transform_indices = @transform_4, window_bounds = array<i64: 32, 128>}, {pipeline_mode = #tpu.pipeline_mode<synchronous>, transform_indices = @transform_5, window_bounds = array<i64: 32, 128>}, {pipeline_mode = #tpu.pipeline_mode<synchronous>, transform_indices = @transform_6, window_bounds = array<i64: 1, 128>}, {pipeline_mode = #tpu.pipeline_mode<synchronous>, transform_indices = @transform_7, window_bounds = array<i64: 1, 128>}, {pipeline_mode = #tpu.pipeline_mode<synchronous>, transform_indices = @transform_8, window_bounds = array<i64: 32, 128>}, {pipeline_mode = #tpu.pipeline_mode<synchronous>, transform_indices = @transform_9, window_bounds = array<i64: 1, 128>}, {transform_indices = @transform_10, window_bounds = array<i64: 2, 128>}]} {
    %c0_i32 = arith.constant 0 : i32
    %0 = arith.cmpi eq, %arg1, %c0_i32 : i32
    %1 = arith.extui %0 : i1 to i32
    %c0_i32_0 = arith.constant 0 : i32
    %2 = arith.cmpi ne, %1, %c0_i32_0 : i32
    scf.if %2 {
      %cst_97 = arith.constant 0.000000e+00 : f32
      %514 = vector.broadcast %cst_97 : f32 to vector<2x32xf32>
      %c0_98 = arith.constant 0 : index
      %c0_99 = arith.constant 0 : index
      %515 = vector.load %arg13[%c0_98, %c0_99] : memref<2x32xf32, #tpu.memory_space<vmem>>, vector<2x32xf32>
      tpu.vector_store %arg13[%c0_98, %c0_99], %514 {strides = array<i32>} : memref<2x32xf32, #tpu.memory_space<vmem>>, vector<2x32xf32>,
      %c0_100 = arith.constant 0 : index
      %c0_101 = arith.constant 0 : index
      %516 = vector.load %arg14[%c0_100, %c0_101] : memref<2x32xf32, #tpu.memory_space<vmem>>, vector<2x32xf32>
      tpu.vector_store %arg14[%c0_100, %c0_101], %514 {strides = array<i32>} : memref<2x32xf32, #tpu.memory_space<vmem>>, vector<2x32xf32>,
      %c0_102 = arith.constant 0 : index
      %c0_103 = arith.constant 0 : index
      %517 = vector.load %arg15[%c0_102, %c0_103] : memref<2x32xf32, #tpu.memory_space<vmem>>, vector<2x32xf32>
      tpu.vector_store %arg15[%c0_102, %c0_103], %514 {strides = array<i32>} : memref<2x32xf32, #tpu.memory_space<vmem>>, vector<2x32xf32>,
      %c0_104 = arith.constant 0 : index
      %c0_105 = arith.constant 0 : index
      %518 = vector.load %arg16[%c0_104, %c0_105] : memref<2x32xf32, #tpu.memory_space<vmem>>, vector<2x32xf32>
      tpu.vector_store %arg16[%c0_104, %c0_105], %514 {strides = array<i32>} : memref<2x32xf32, #tpu.memory_space<vmem>>, vector<2x32xf32>,
    } else {
    }
    %c0 = arith.constant 0 : index
    %c0_1 = arith.constant 0 : index
    %3 = vector.load %arg4[%c0, %c0_1] : memref<16x128xbf16, #tpu.memory_space<vmem>>, vector<16x128xbf16>
    %c0_2 = arith.constant 0 : index
    %c0_3 = arith.constant 0 : index
    %4 = vector.load %arg5[%c0_2, %c0_3] : memref<32x128xbf16, #tpu.memory_space<vmem>>, vector<32x128xbf16>
    %c0_4 = arith.constant 0 : index
    %c0_5 = arith.constant 0 : index
    %5 = vector.load %arg6[%c0_4, %c0_5] : memref<32x128xbf16, #tpu.memory_space<vmem>>, vector<32x128xbf16>
    %c0_6 = arith.constant 0 : index
    %c0_7 = arith.constant 0 : index
    %6 = vector.load %arg7[%c0_6, %c0_7] : memref<32x128xbf16, #tpu.memory_space<vmem>>, vector<32x128xbf16>
    %c0_8 = arith.constant 0 : index
    %c0_9 = arith.constant 0 : index
    %7 = vector.load %arg8[%c0_8, %c0_9] : memref<1x128xf32, #tpu.memory_space<vmem>>, vector<1x128xf32>
    %8 = vector.shape_cast %7 : vector<1x128xf32> to vector<1x128xf32>
    %9 = vector.broadcast %8 : vector<1x128xf32> to vector<2x128xf32>
    %c0_10 = arith.constant 0 : index
    %c0_11 = arith.constant 0 : index
    %10 = vector.load %arg9[%c0_10, %c0_11] : memref<1x128xf32, #tpu.memory_space<vmem>>, vector<1x128xf32>
    %11 = vector.shape_cast %10 : vector<1x128xf32> to vector<1x128xf32>
    %12 = vector.broadcast %11 : vector<1x128xf32> to vector<2x128xf32>
    %c0_12 = arith.constant 0 : index
    %c0_13 = arith.constant 0 : index
    %13 = vector.load %arg2[%c0_12, %c0_13] : memref<2x1xi32, #tpu.memory_space<vmem>>, vector<2x1xi32>
    %c8_i32 = arith.constant 8 : i32
    %14 = arith.muli %arg1, %c8_i32 : i32
    %c0_14 = arith.constant 0 : index
    %c0_15 = arith.constant 0 : index
    %15 = vector.load %arg13[%c0_14, %c0_15] : memref<2x32xf32, #tpu.memory_space<vmem>>, vector<2x32xf32>
    %c0_16 = arith.constant 0 : index
    %c0_17 = arith.constant 0 : index
    %16 = vector.load %arg14[%c0_16, %c0_17] : memref<2x32xf32, #tpu.memory_space<vmem>>, vector<2x32xf32>
    %c0_18 = arith.constant 0 : index
    %c0_19 = arith.constant 0 : index
    %17 = vector.load %arg15[%c0_18, %c0_19] : memref<2x32xf32, #tpu.memory_space<vmem>>, vector<2x32xf32>
    %c0_20 = arith.constant 0 : index
    %c0_21 = arith.constant 0 : index
    %18 = vector.load %arg16[%c0_20, %c0_21] : memref<2x32xf32, #tpu.memory_space<vmem>>, vector<2x32xf32>
    %c0_i32_22 = arith.constant 0 : i32
    %19 = arith.addi %14, %c0_i32_22 : i32
    %20 = vector.broadcast %19 : i32 to vector<2x1xi32>
    %21 = arith.cmpi slt, %20, %13 : vector<2x1xi32>
    %22 = arith.index_cast %c0_i32_22 : i32 to index
    %c0_23 = arith.constant 0 : index
    %c0_24 = arith.constant 0 : index
    %23 = vector.load %arg3[%22, %c0_23, %c0_24] : memref<8x2x16xbf16, #tpu.memory_space<vmem>>, vector<1x2x16xbf16>
    %24 = vector.shape_cast %23 : vector<1x2x16xbf16> to vector<2x16xbf16>
    %cst = arith.constant dense<0.000000e+00> : vector<2x128xf32>
    %25 = tpu.matmul %24, %3, %cst {dimension_numbers = #tpu.dot_dimension_numbers<[1], [0], [0], [1], [0, 0, 1, 1], [], []>} : vector<2x16xbf16>, vector<16x128xbf16>, vector<2x128xf32> -> vector<2x128xf32>
    %26 = arith.truncf %17 : vector<2x32xf32> to vector<2x32xbf16>
    %cst_25 = arith.constant dense<0.000000e+00> : vector<2x128xf32>
    %27 = tpu.matmul %26, %6, %cst_25 {dimension_numbers = #tpu.dot_dimension_numbers<[1], [0], [0], [1], [0, 0, 1, 1], [], []>} : vector<2x32xbf16>, vector<32x128xbf16>, vector<2x128xf32> -> vector<2x128xf32>
    %28 = arith.truncf %15 : vector<2x32xf32> to vector<2x32xbf16>
    %cst_26 = arith.constant dense<0.000000e+00> : vector<2x128xf32>
    %29 = tpu.matmul %28, %4, %cst_26 {dimension_numbers = #tpu.dot_dimension_numbers<[1], [0], [0], [1], [0, 0, 1, 1], [], []>} : vector<2x32xbf16>, vector<32x128xbf16>, vector<2x128xf32> -> vector<2x128xf32>
    %30 = arith.addf %25, %29 : vector<2x128xf32>
    %31 = arith.addf %30, %9 : vector<2x128xf32>
    %32 = vector.extract_strided_slice %31 {offsets = [0, 0], sizes = [2, 96], strides = [1, 1]} : vector<2x128xf32> to vector<2x96xf32>
    %33 = arith.negf %32 : vector<2x96xf32>
    %34 = math.exp %33 : vector<2x96xf32>
    %cst_27 = arith.constant 1.000000e+00 : f32
    %35 = vector.broadcast %cst_27 : f32 to vector<2x96xf32>
    %36 = arith.addf %35, %34 : vector<2x96xf32>
    %37 = arith.divf %35, %36 : vector<2x96xf32>
    %38 = vector.extract_strided_slice %31 {offsets = [0, 96], sizes = [2, 32], strides = [1, 1]} : vector<2x128xf32> to vector<2x32xf32>
    %39 = math.tanh %38 : vector<2x32xf32>
    %40 = vector.extract_strided_slice %37 {offsets = [0, 0], sizes = [2, 32], strides = [1, 1]} : vector<2x96xf32> to vector<2x32xf32>
    %41 = vector.extract_strided_slice %37 {offsets = [0, 32], sizes = [2, 32], strides = [1, 1]} : vector<2x96xf32> to vector<2x32xf32>
    %42 = vector.extract_strided_slice %37 {offsets = [0, 64], sizes = [2, 32], strides = [1, 1]} : vector<2x96xf32> to vector<2x32xf32>
    %43 = arith.mulf %41, %16 : vector<2x32xf32>
    %44 = arith.mulf %40, %39 : vector<2x32xf32>
    %45 = arith.addf %43, %44 : vector<2x32xf32>
    %46 = math.tanh %45 : vector<2x32xf32>
    %47 = arith.mulf %42, %46 : vector<2x32xf32>
    %48 = vector.shape_cast %21 : vector<2x1xi1> to vector<2x1xi1>
    %49 = vector.broadcast %48 : vector<2x1xi1> to vector<2x32xi1>
    %50 = arith.select %49, %47, %15 : vector<2x32xi1>, vector<2x32xf32>
    %51 = vector.shape_cast %21 : vector<2x1xi1> to vector<2x1xi1>
    %52 = vector.broadcast %51 : vector<2x1xi1> to vector<2x32xi1>
    %53 = arith.select %52, %45, %16 : vector<2x32xi1>, vector<2x32xf32>
    %54 = arith.truncf %50 : vector<2x32xf32> to vector<2x32xbf16>
    %cst_28 = arith.constant dense<0.000000e+00> : vector<2x128xf32>
    %55 = tpu.matmul %54, %5, %cst_28 {dimension_numbers = #tpu.dot_dimension_numbers<[1], [0], [0], [1], [0, 0, 1, 1], [], []>} : vector<2x32xbf16>, vector<32x128xbf16>, vector<2x128xf32> -> vector<2x128xf32>
    %56 = arith.addf %27, %55 : vector<2x128xf32>
    %57 = arith.addf %56, %12 : vector<2x128xf32>
    %58 = vector.extract_strided_slice %57 {offsets = [0, 0], sizes = [2, 96], strides = [1, 1]} : vector<2x128xf32> to vector<2x96xf32>
    %59 = arith.negf %58 : vector<2x96xf32>
    %60 = math.exp %59 : vector<2x96xf32>
    %cst_29 = arith.constant 1.000000e+00 : f32
    %61 = vector.broadcast %cst_29 : f32 to vector<2x96xf32>
    %62 = arith.addf %61, %60 : vector<2x96xf32>
    %63 = arith.divf %61, %62 : vector<2x96xf32>
    %64 = vector.extract_strided_slice %57 {offsets = [0, 96], sizes = [2, 32], strides = [1, 1]} : vector<2x128xf32> to vector<2x32xf32>
    %65 = math.tanh %64 : vector<2x32xf32>
    %66 = vector.extract_strided_slice %63 {offsets = [0, 0], sizes = [2, 32], strides = [1, 1]} : vector<2x96xf32> to vector<2x32xf32>
    %67 = vector.extract_strided_slice %63 {offsets = [0, 32], sizes = [2, 32], strides = [1, 1]} : vector<2x96xf32> to vector<2x32xf32>
    %68 = vector.extract_strided_slice %63 {offsets = [0, 64], sizes = [2, 32], strides = [1, 1]} : vector<2x96xf32> to vector<2x32xf32>
    %69 = arith.mulf %67, %18 : vector<2x32xf32>
    %70 = arith.mulf %66, %65 : vector<2x32xf32>
    %71 = arith.addf %69, %70 : vector<2x32xf32>
    %72 = math.tanh %71 : vector<2x32xf32>
    %73 = arith.mulf %68, %72 : vector<2x32xf32>
    %74 = vector.shape_cast %21 : vector<2x1xi1> to vector<2x1xi1>
    %75 = vector.broadcast %74 : vector<2x1xi1> to vector<2x32xi1>
    %76 = arith.select %75, %73, %17 : vector<2x32xi1>, vector<2x32xf32>
    %77 = vector.shape_cast %21 : vector<2x1xi1> to vector<2x1xi1>
    %78 = vector.broadcast %77 : vector<2x1xi1> to vector<2x32xi1>
    %79 = arith.select %78, %71, %18 : vector<2x32xi1>, vector<2x32xf32>
    %c1_i32 = arith.constant 1 : i32
    %80 = arith.addi %14, %c1_i32 : i32
    %81 = vector.broadcast %80 : i32 to vector<2x1xi32>
    %82 = arith.cmpi slt, %81, %13 : vector<2x1xi32>
    %83 = arith.index_cast %c1_i32 : i32 to index
    %c0_30 = arith.constant 0 : index
    %c0_31 = arith.constant 0 : index
    %84 = vector.load %arg3[%83, %c0_30, %c0_31] : memref<8x2x16xbf16, #tpu.memory_space<vmem>>, vector<1x2x16xbf16>
    %85 = vector.shape_cast %84 : vector<1x2x16xbf16> to vector<2x16xbf16>
    %cst_32 = arith.constant dense<0.000000e+00> : vector<2x128xf32>
    %86 = tpu.matmul %85, %3, %cst_32 {dimension_numbers = #tpu.dot_dimension_numbers<[1], [0], [0], [1], [0, 0, 1, 1], [], []>} : vector<2x16xbf16>, vector<16x128xbf16>, vector<2x128xf32> -> vector<2x128xf32>
    %87 = arith.truncf %76 : vector<2x32xf32> to vector<2x32xbf16>
    %cst_33 = arith.constant dense<0.000000e+00> : vector<2x128xf32>
    %88 = tpu.matmul %87, %6, %cst_33 {dimension_numbers = #tpu.dot_dimension_numbers<[1], [0], [0], [1], [0, 0, 1, 1], [], []>} : vector<2x32xbf16>, vector<32x128xbf16>, vector<2x128xf32> -> vector<2x128xf32>
    %89 = arith.truncf %50 : vector<2x32xf32> to vector<2x32xbf16>
    %cst_34 = arith.constant dense<0.000000e+00> : vector<2x128xf32>
    %90 = tpu.matmul %89, %4, %cst_34 {dimension_numbers = #tpu.dot_dimension_numbers<[1], [0], [0], [1], [0, 0, 1, 1], [], []>} : vector<2x32xbf16>, vector<32x128xbf16>, vector<2x128xf32> -> vector<2x128xf32>
    %91 = arith.addf %86, %90 : vector<2x128xf32>
    %92 = arith.addf %91, %9 : vector<2x128xf32>
    %93 = vector.extract_strided_slice %92 {offsets = [0, 0], sizes = [2, 96], strides = [1, 1]} : vector<2x128xf32> to vector<2x96xf32>
    %94 = arith.negf %93 : vector<2x96xf32>
    %95 = math.exp %94 : vector<2x96xf32>
    %cst_35 = arith.constant 1.000000e+00 : f32
    %96 = vector.broadcast %cst_35 : f32 to vector<2x96xf32>
    %97 = arith.addf %96, %95 : vector<2x96xf32>
    %98 = arith.divf %96, %97 : vector<2x96xf32>
    %99 = vector.extract_strided_slice %92 {offsets = [0, 96], sizes = [2, 32], strides = [1, 1]} : vector<2x128xf32> to vector<2x32xf32>
    %100 = math.tanh %99 : vector<2x32xf32>
    %101 = vector.extract_strided_slice %98 {offsets = [0, 0], sizes = [2, 32], strides = [1, 1]} : vector<2x96xf32> to vector<2x32xf32>
    %102 = vector.extract_strided_slice %98 {offsets = [0, 32], sizes = [2, 32], strides = [1, 1]} : vector<2x96xf32> to vector<2x32xf32>
    %103 = vector.extract_strided_slice %98 {offsets = [0, 64], sizes = [2, 32], strides = [1, 1]} : vector<2x96xf32> to vector<2x32xf32>
    %104 = arith.mulf %102, %53 : vector<2x32xf32>
    %105 = arith.mulf %101, %100 : vector<2x32xf32>
    %106 = arith.addf %104, %105 : vector<2x32xf32>
    %107 = math.tanh %106 : vector<2x32xf32>
    %108 = arith.mulf %103, %107 : vector<2x32xf32>
    %109 = vector.shape_cast %82 : vector<2x1xi1> to vector<2x1xi1>
    %110 = vector.broadcast %109 : vector<2x1xi1> to vector<2x32xi1>
    %111 = arith.select %110, %108, %50 : vector<2x32xi1>, vector<2x32xf32>
    %112 = vector.shape_cast %82 : vector<2x1xi1> to vector<2x1xi1>
    %113 = vector.broadcast %112 : vector<2x1xi1> to vector<2x32xi1>
    %114 = arith.select %113, %106, %53 : vector<2x32xi1>, vector<2x32xf32>
    %115 = arith.truncf %111 : vector<2x32xf32> to vector<2x32xbf16>
    %cst_36 = arith.constant dense<0.000000e+00> : vector<2x128xf32>
    %116 = tpu.matmul %115, %5, %cst_36 {dimension_numbers = #tpu.dot_dimension_numbers<[1], [0], [0], [1], [0, 0, 1, 1], [], []>} : vector<2x32xbf16>, vector<32x128xbf16>, vector<2x128xf32> -> vector<2x128xf32>
    %117 = arith.addf %88, %116 : vector<2x128xf32>
    %118 = arith.addf %117, %12 : vector<2x128xf32>
    %119 = vector.extract_strided_slice %118 {offsets = [0, 0], sizes = [2, 96], strides = [1, 1]} : vector<2x128xf32> to vector<2x96xf32>
    %120 = arith.negf %119 : vector<2x96xf32>
    %121 = math.exp %120 : vector<2x96xf32>
    %cst_37 = arith.constant 1.000000e+00 : f32
    %122 = vector.broadcast %cst_37 : f32 to vector<2x96xf32>
    %123 = arith.addf %122, %121 : vector<2x96xf32>
    %124 = arith.divf %122, %123 : vector<2x96xf32>
    %125 = vector.extract_strided_slice %118 {offsets = [0, 96], sizes = [2, 32], strides = [1, 1]} : vector<2x128xf32> to vector<2x32xf32>
    %126 = math.tanh %125 : vector<2x32xf32>
    %127 = vector.extract_strided_slice %124 {offsets = [0, 0], sizes = [2, 32], strides = [1, 1]} : vector<2x96xf32> to vector<2x32xf32>
    %128 = vector.extract_strided_slice %124 {offsets = [0, 32], sizes = [2, 32], strides = [1, 1]} : vector<2x96xf32> to vector<2x32xf32>
    %129 = vector.extract_strided_slice %124 {offsets = [0, 64], sizes = [2, 32], strides = [1, 1]} : vector<2x96xf32> to vector<2x32xf32>
    %130 = arith.mulf %128, %79 : vector<2x32xf32>
    %131 = arith.mulf %127, %126 : vector<2x32xf32>
    %132 = arith.addf %130, %131 : vector<2x32xf32>
    %133 = math.tanh %132 : vector<2x32xf32>
    %134 = arith.mulf %129, %133 : vector<2x32xf32>
    %135 = vector.shape_cast %82 : vector<2x1xi1> to vector<2x1xi1>
    %136 = vector.broadcast %135 : vector<2x1xi1> to vector<2x32xi1>
    %137 = arith.select %136, %134, %76 : vector<2x32xi1>, vector<2x32xf32>
    %138 = vector.shape_cast %82 : vector<2x1xi1> to vector<2x1xi1>
    %139 = vector.broadcast %138 : vector<2x1xi1> to vector<2x32xi1>
    %140 = arith.select %139, %132, %79 : vector<2x32xi1>, vector<2x32xf32>
    %c2_i32 = arith.constant 2 : i32
    %141 = arith.addi %14, %c2_i32 : i32
    %142 = vector.broadcast %141 : i32 to vector<2x1xi32>
    %143 = arith.cmpi slt, %142, %13 : vector<2x1xi32>
    %144 = arith.index_cast %c2_i32 : i32 to index
    %c0_38 = arith.constant 0 : index
    %c0_39 = arith.constant 0 : index
    %145 = vector.load %arg3[%144, %c0_38, %c0_39] : memref<8x2x16xbf16, #tpu.memory_space<vmem>>, vector<1x2x16xbf16>
    %146 = vector.shape_cast %145 : vector<1x2x16xbf16> to vector<2x16xbf16>
    %cst_40 = arith.constant dense<0.000000e+00> : vector<2x128xf32>
    %147 = tpu.matmul %146, %3, %cst_40 {dimension_numbers = #tpu.dot_dimension_numbers<[1], [0], [0], [1], [0, 0, 1, 1], [], []>} : vector<2x16xbf16>, vector<16x128xbf16>, vector<2x128xf32> -> vector<2x128xf32>
    %148 = arith.truncf %137 : vector<2x32xf32> to vector<2x32xbf16>
    %cst_41 = arith.constant dense<0.000000e+00> : vector<2x128xf32>
    %149 = tpu.matmul %148, %6, %cst_41 {dimension_numbers = #tpu.dot_dimension_numbers<[1], [0], [0], [1], [0, 0, 1, 1], [], []>} : vector<2x32xbf16>, vector<32x128xbf16>, vector<2x128xf32> -> vector<2x128xf32>
    %150 = arith.truncf %111 : vector<2x32xf32> to vector<2x32xbf16>
    %cst_42 = arith.constant dense<0.000000e+00> : vector<2x128xf32>
    %151 = tpu.matmul %150, %4, %cst_42 {dimension_numbers = #tpu.dot_dimension_numbers<[1], [0], [0], [1], [0, 0, 1, 1], [], []>} : vector<2x32xbf16>, vector<32x128xbf16>, vector<2x128xf32> -> vector<2x128xf32>
    %152 = arith.addf %147, %151 : vector<2x128xf32>
    %153 = arith.addf %152, %9 : vector<2x128xf32>
    %154 = vector.extract_strided_slice %153 {offsets = [0, 0], sizes = [2, 96], strides = [1, 1]} : vector<2x128xf32> to vector<2x96xf32>
    %155 = arith.negf %154 : vector<2x96xf32>
    %156 = math.exp %155 : vector<2x96xf32>
    %cst_43 = arith.constant 1.000000e+00 : f32
    %157 = vector.broadcast %cst_43 : f32 to vector<2x96xf32>
    %158 = arith.addf %157, %156 : vector<2x96xf32>
    %159 = arith.divf %157, %158 : vector<2x96xf32>
    %160 = vector.extract_strided_slice %153 {offsets = [0, 96], sizes = [2, 32], strides = [1, 1]} : vector<2x128xf32> to vector<2x32xf32>
    %161 = math.tanh %160 : vector<2x32xf32>
    %162 = vector.extract_strided_slice %159 {offsets = [0, 0], sizes = [2, 32], strides = [1, 1]} : vector<2x96xf32> to vector<2x32xf32>
    %163 = vector.extract_strided_slice %159 {offsets = [0, 32], sizes = [2, 32], strides = [1, 1]} : vector<2x96xf32> to vector<2x32xf32>
    %164 = vector.extract_strided_slice %159 {offsets = [0, 64], sizes = [2, 32], strides = [1, 1]} : vector<2x96xf32> to vector<2x32xf32>
    %165 = arith.mulf %163, %114 : vector<2x32xf32>
    %166 = arith.mulf %162, %161 : vector<2x32xf32>
    %167 = arith.addf %165, %166 : vector<2x32xf32>
    %168 = math.tanh %167 : vector<2x32xf32>
    %169 = arith.mulf %164, %168 : vector<2x32xf32>
    %170 = vector.shape_cast %143 : vector<2x1xi1> to vector<2x1xi1>
    %171 = vector.broadcast %170 : vector<2x1xi1> to vector<2x32xi1>
    %172 = arith.select %171, %169, %111 : vector<2x32xi1>, vector<2x32xf32>
    %173 = vector.shape_cast %143 : vector<2x1xi1> to vector<2x1xi1>
    %174 = vector.broadcast %173 : vector<2x1xi1> to vector<2x32xi1>
    %175 = arith.select %174, %167, %114 : vector<2x32xi1>, vector<2x32xf32>
    %176 = arith.truncf %172 : vector<2x32xf32> to vector<2x32xbf16>
    %cst_44 = arith.constant dense<0.000000e+00> : vector<2x128xf32>
    %177 = tpu.matmul %176, %5, %cst_44 {dimension_numbers = #tpu.dot_dimension_numbers<[1], [0], [0], [1], [0, 0, 1, 1], [], []>} : vector<2x32xbf16>, vector<32x128xbf16>, vector<2x128xf32> -> vector<2x128xf32>
    %178 = arith.addf %149, %177 : vector<2x128xf32>
    %179 = arith.addf %178, %12 : vector<2x128xf32>
    %180 = vector.extract_strided_slice %179 {offsets = [0, 0], sizes = [2, 96], strides = [1, 1]} : vector<2x128xf32> to vector<2x96xf32>
    %181 = arith.negf %180 : vector<2x96xf32>
    %182 = math.exp %181 : vector<2x96xf32>
    %cst_45 = arith.constant 1.000000e+00 : f32
    %183 = vector.broadcast %cst_45 : f32 to vector<2x96xf32>
    %184 = arith.addf %183, %182 : vector<2x96xf32>
    %185 = arith.divf %183, %184 : vector<2x96xf32>
    %186 = vector.extract_strided_slice %179 {offsets = [0, 96], sizes = [2, 32], strides = [1, 1]} : vector<2x128xf32> to vector<2x32xf32>
    %187 = math.tanh %186 : vector<2x32xf32>
    %188 = vector.extract_strided_slice %185 {offsets = [0, 0], sizes = [2, 32], strides = [1, 1]} : vector<2x96xf32> to vector<2x32xf32>
    %189 = vector.extract_strided_slice %185 {offsets = [0, 32], sizes = [2, 32], strides = [1, 1]} : vector<2x96xf32> to vector<2x32xf32>
    %190 = vector.extract_strided_slice %185 {offsets = [0, 64], sizes = [2, 32], strides = [1, 1]} : vector<2x96xf32> to vector<2x32xf32>
    %191 = arith.mulf %189, %140 : vector<2x32xf32>
    %192 = arith.mulf %188, %187 : vector<2x32xf32>
    %193 = arith.addf %191, %192 : vector<2x32xf32>
    %194 = math.tanh %193 : vector<2x32xf32>
    %195 = arith.mulf %190, %194 : vector<2x32xf32>
    %196 = vector.shape_cast %143 : vector<2x1xi1> to vector<2x1xi1>
    %197 = vector.broadcast %196 : vector<2x1xi1> to vector<2x32xi1>
    %198 = arith.select %197, %195, %137 : vector<2x32xi1>, vector<2x32xf32>
    %199 = vector.shape_cast %143 : vector<2x1xi1> to vector<2x1xi1>
    %200 = vector.broadcast %199 : vector<2x1xi1> to vector<2x32xi1>
    %201 = arith.select %200, %193, %140 : vector<2x32xi1>, vector<2x32xf32>
    %c3_i32 = arith.constant 3 : i32
    %202 = arith.addi %14, %c3_i32 : i32
    %203 = vector.broadcast %202 : i32 to vector<2x1xi32>
    %204 = arith.cmpi slt, %203, %13 : vector<2x1xi32>
    %205 = arith.index_cast %c3_i32 : i32 to index
    %c0_46 = arith.constant 0 : index
    %c0_47 = arith.constant 0 : index
    %206 = vector.load %arg3[%205, %c0_46, %c0_47] : memref<8x2x16xbf16, #tpu.memory_space<vmem>>, vector<1x2x16xbf16>
    %207 = vector.shape_cast %206 : vector<1x2x16xbf16> to vector<2x16xbf16>
    %cst_48 = arith.constant dense<0.000000e+00> : vector<2x128xf32>
    %208 = tpu.matmul %207, %3, %cst_48 {dimension_numbers = #tpu.dot_dimension_numbers<[1], [0], [0], [1], [0, 0, 1, 1], [], []>} : vector<2x16xbf16>, vector<16x128xbf16>, vector<2x128xf32> -> vector<2x128xf32>
    %209 = arith.truncf %198 : vector<2x32xf32> to vector<2x32xbf16>
    %cst_49 = arith.constant dense<0.000000e+00> : vector<2x128xf32>
    %210 = tpu.matmul %209, %6, %cst_49 {dimension_numbers = #tpu.dot_dimension_numbers<[1], [0], [0], [1], [0, 0, 1, 1], [], []>} : vector<2x32xbf16>, vector<32x128xbf16>, vector<2x128xf32> -> vector<2x128xf32>
    %211 = arith.truncf %172 : vector<2x32xf32> to vector<2x32xbf16>
    %cst_50 = arith.constant dense<0.000000e+00> : vector<2x128xf32>
    %212 = tpu.matmul %211, %4, %cst_50 {dimension_numbers = #tpu.dot_dimension_numbers<[1], [0], [0], [1], [0, 0, 1, 1], [], []>} : vector<2x32xbf16>, vector<32x128xbf16>, vector<2x128xf32> -> vector<2x128xf32>
    %213 = arith.addf %208, %212 : vector<2x128xf32>
    %214 = arith.addf %213, %9 : vector<2x128xf32>
    %215 = vector.extract_strided_slice %214 {offsets = [0, 0], sizes = [2, 96], strides = [1, 1]} : vector<2x128xf32> to vector<2x96xf32>
    %216 = arith.negf %215 : vector<2x96xf32>
    %217 = math.exp %216 : vector<2x96xf32>
    %cst_51 = arith.constant 1.000000e+00 : f32
    %218 = vector.broadcast %cst_51 : f32 to vector<2x96xf32>
    %219 = arith.addf %218, %217 : vector<2x96xf32>
    %220 = arith.divf %218, %219 : vector<2x96xf32>
    %221 = vector.extract_strided_slice %214 {offsets = [0, 96], sizes = [2, 32], strides = [1, 1]} : vector<2x128xf32> to vector<2x32xf32>
    %222 = math.tanh %221 : vector<2x32xf32>
    %223 = vector.extract_strided_slice %220 {offsets = [0, 0], sizes = [2, 32], strides = [1, 1]} : vector<2x96xf32> to vector<2x32xf32>
    %224 = vector.extract_strided_slice %220 {offsets = [0, 32], sizes = [2, 32], strides = [1, 1]} : vector<2x96xf32> to vector<2x32xf32>
    %225 = vector.extract_strided_slice %220 {offsets = [0, 64], sizes = [2, 32], strides = [1, 1]} : vector<2x96xf32> to vector<2x32xf32>
    %226 = arith.mulf %224, %175 : vector<2x32xf32>
    %227 = arith.mulf %223, %222 : vector<2x32xf32>
    %228 = arith.addf %226, %227 : vector<2x32xf32>
    %229 = math.tanh %228 : vector<2x32xf32>
    %230 = arith.mulf %225, %229 : vector<2x32xf32>
    %231 = vector.shape_cast %204 : vector<2x1xi1> to vector<2x1xi1>
    %232 = vector.broadcast %231 : vector<2x1xi1> to vector<2x32xi1>
    %233 = arith.select %232, %230, %172 : vector<2x32xi1>, vector<2x32xf32>
    %234 = vector.shape_cast %204 : vector<2x1xi1> to vector<2x1xi1>
    %235 = vector.broadcast %234 : vector<2x1xi1> to vector<2x32xi1>
    %236 = arith.select %235, %228, %175 : vector<2x32xi1>, vector<2x32xf32>
    %237 = arith.truncf %233 : vector<2x32xf32> to vector<2x32xbf16>
    %cst_52 = arith.constant dense<0.000000e+00> : vector<2x128xf32>
    %238 = tpu.matmul %237, %5, %cst_52 {dimension_numbers = #tpu.dot_dimension_numbers<[1], [0], [0], [1], [0, 0, 1, 1], [], []>} : vector<2x32xbf16>, vector<32x128xbf16>, vector<2x128xf32> -> vector<2x128xf32>
    %239 = arith.addf %210, %238 : vector<2x128xf32>
    %240 = arith.addf %239, %12 : vector<2x128xf32>
    %241 = vector.extract_strided_slice %240 {offsets = [0, 0], sizes = [2, 96], strides = [1, 1]} : vector<2x128xf32> to vector<2x96xf32>
    %242 = arith.negf %241 : vector<2x96xf32>
    %243 = math.exp %242 : vector<2x96xf32>
    %cst_53 = arith.constant 1.000000e+00 : f32
    %244 = vector.broadcast %cst_53 : f32 to vector<2x96xf32>
    %245 = arith.addf %244, %243 : vector<2x96xf32>
    %246 = arith.divf %244, %245 : vector<2x96xf32>
    %247 = vector.extract_strided_slice %240 {offsets = [0, 96], sizes = [2, 32], strides = [1, 1]} : vector<2x128xf32> to vector<2x32xf32>
    %248 = math.tanh %247 : vector<2x32xf32>
    %249 = vector.extract_strided_slice %246 {offsets = [0, 0], sizes = [2, 32], strides = [1, 1]} : vector<2x96xf32> to vector<2x32xf32>
    %250 = vector.extract_strided_slice %246 {offsets = [0, 32], sizes = [2, 32], strides = [1, 1]} : vector<2x96xf32> to vector<2x32xf32>
    %251 = vector.extract_strided_slice %246 {offsets = [0, 64], sizes = [2, 32], strides = [1, 1]} : vector<2x96xf32> to vector<2x32xf32>
    %252 = arith.mulf %250, %201 : vector<2x32xf32>
    %253 = arith.mulf %249, %248 : vector<2x32xf32>
    %254 = arith.addf %252, %253 : vector<2x32xf32>
    %255 = math.tanh %254 : vector<2x32xf32>
    %256 = arith.mulf %251, %255 : vector<2x32xf32>
    %257 = vector.shape_cast %204 : vector<2x1xi1> to vector<2x1xi1>
    %258 = vector.broadcast %257 : vector<2x1xi1> to vector<2x32xi1>
    %259 = arith.select %258, %256, %198 : vector<2x32xi1>, vector<2x32xf32>
    %260 = vector.shape_cast %204 : vector<2x1xi1> to vector<2x1xi1>
    %261 = vector.broadcast %260 : vector<2x1xi1> to vector<2x32xi1>
    %262 = arith.select %261, %254, %201 : vector<2x32xi1>, vector<2x32xf32>
    %c4_i32 = arith.constant 4 : i32
    %263 = arith.addi %14, %c4_i32 : i32
    %264 = vector.broadcast %263 : i32 to vector<2x1xi32>
    %265 = arith.cmpi slt, %264, %13 : vector<2x1xi32>
    %266 = arith.index_cast %c4_i32 : i32 to index
    %c0_54 = arith.constant 0 : index
    %c0_55 = arith.constant 0 : index
    %267 = vector.load %arg3[%266, %c0_54, %c0_55] : memref<8x2x16xbf16, #tpu.memory_space<vmem>>, vector<1x2x16xbf16>
    %268 = vector.shape_cast %267 : vector<1x2x16xbf16> to vector<2x16xbf16>
    %cst_56 = arith.constant dense<0.000000e+00> : vector<2x128xf32>
    %269 = tpu.matmul %268, %3, %cst_56 {dimension_numbers = #tpu.dot_dimension_numbers<[1], [0], [0], [1], [0, 0, 1, 1], [], []>} : vector<2x16xbf16>, vector<16x128xbf16>, vector<2x128xf32> -> vector<2x128xf32>
    %270 = arith.truncf %259 : vector<2x32xf32> to vector<2x32xbf16>
    %cst_57 = arith.constant dense<0.000000e+00> : vector<2x128xf32>
    %271 = tpu.matmul %270, %6, %cst_57 {dimension_numbers = #tpu.dot_dimension_numbers<[1], [0], [0], [1], [0, 0, 1, 1], [], []>} : vector<2x32xbf16>, vector<32x128xbf16>, vector<2x128xf32> -> vector<2x128xf32>
    %272 = arith.truncf %233 : vector<2x32xf32> to vector<2x32xbf16>
    %cst_58 = arith.constant dense<0.000000e+00> : vector<2x128xf32>
    %273 = tpu.matmul %272, %4, %cst_58 {dimension_numbers = #tpu.dot_dimension_numbers<[1], [0], [0], [1], [0, 0, 1, 1], [], []>} : vector<2x32xbf16>, vector<32x128xbf16>, vector<2x128xf32> -> vector<2x128xf32>
    %274 = arith.addf %269, %273 : vector<2x128xf32>
    %275 = arith.addf %274, %9 : vector<2x128xf32>
    %276 = vector.extract_strided_slice %275 {offsets = [0, 0], sizes = [2, 96], strides = [1, 1]} : vector<2x128xf32> to vector<2x96xf32>
    %277 = arith.negf %276 : vector<2x96xf32>
    %278 = math.exp %277 : vector<2x96xf32>
    %cst_59 = arith.constant 1.000000e+00 : f32
    %279 = vector.broadcast %cst_59 : f32 to vector<2x96xf32>
    %280 = arith.addf %279, %278 : vector<2x96xf32>
    %281 = arith.divf %279, %280 : vector<2x96xf32>
    %282 = vector.extract_strided_slice %275 {offsets = [0, 96], sizes = [2, 32], strides = [1, 1]} : vector<2x128xf32> to vector<2x32xf32>
    %283 = math.tanh %282 : vector<2x32xf32>
    %284 = vector.extract_strided_slice %281 {offsets = [0, 0], sizes = [2, 32], strides = [1, 1]} : vector<2x96xf32> to vector<2x32xf32>
    %285 = vector.extract_strided_slice %281 {offsets = [0, 32], sizes = [2, 32], strides = [1, 1]} : vector<2x96xf32> to vector<2x32xf32>
    %286 = vector.extract_strided_slice %281 {offsets = [0, 64], sizes = [2, 32], strides = [1, 1]} : vector<2x96xf32> to vector<2x32xf32>
    %287 = arith.mulf %285, %236 : vector<2x32xf32>
    %288 = arith.mulf %284, %283 : vector<2x32xf32>
    %289 = arith.addf %287, %288 : vector<2x32xf32>
    %290 = math.tanh %289 : vector<2x32xf32>
    %291 = arith.mulf %286, %290 : vector<2x32xf32>
    %292 = vector.shape_cast %265 : vector<2x1xi1> to vector<2x1xi1>
    %293 = vector.broadcast %292 : vector<2x1xi1> to vector<2x32xi1>
    %294 = arith.select %293, %291, %233 : vector<2x32xi1>, vector<2x32xf32>
    %295 = vector.shape_cast %265 : vector<2x1xi1> to vector<2x1xi1>
    %296 = vector.broadcast %295 : vector<2x1xi1> to vector<2x32xi1>
    %297 = arith.select %296, %289, %236 : vector<2x32xi1>, vector<2x32xf32>
    %298 = arith.truncf %294 : vector<2x32xf32> to vector<2x32xbf16>
    %cst_60 = arith.constant dense<0.000000e+00> : vector<2x128xf32>
    %299 = tpu.matmul %298, %5, %cst_60 {dimension_numbers = #tpu.dot_dimension_numbers<[1], [0], [0], [1], [0, 0, 1, 1], [], []>} : vector<2x32xbf16>, vector<32x128xbf16>, vector<2x128xf32> -> vector<2x128xf32>
    %300 = arith.addf %271, %299 : vector<2x128xf32>
    %301 = arith.addf %300, %12 : vector<2x128xf32>
    %302 = vector.extract_strided_slice %301 {offsets = [0, 0], sizes = [2, 96], strides = [1, 1]} : vector<2x128xf32> to vector<2x96xf32>
    %303 = arith.negf %302 : vector<2x96xf32>
    %304 = math.exp %303 : vector<2x96xf32>
    %cst_61 = arith.constant 1.000000e+00 : f32
    %305 = vector.broadcast %cst_61 : f32 to vector<2x96xf32>
    %306 = arith.addf %305, %304 : vector<2x96xf32>
    %307 = arith.divf %305, %306 : vector<2x96xf32>
    %308 = vector.extract_strided_slice %301 {offsets = [0, 96], sizes = [2, 32], strides = [1, 1]} : vector<2x128xf32> to vector<2x32xf32>
    %309 = math.tanh %308 : vector<2x32xf32>
    %310 = vector.extract_strided_slice %307 {offsets = [0, 0], sizes = [2, 32], strides = [1, 1]} : vector<2x96xf32> to vector<2x32xf32>
    %311 = vector.extract_strided_slice %307 {offsets = [0, 32], sizes = [2, 32], strides = [1, 1]} : vector<2x96xf32> to vector<2x32xf32>
    %312 = vector.extract_strided_slice %307 {offsets = [0, 64], sizes = [2, 32], strides = [1, 1]} : vector<2x96xf32> to vector<2x32xf32>
    %313 = arith.mulf %311, %262 : vector<2x32xf32>
    %314 = arith.mulf %310, %309 : vector<2x32xf32>
    %315 = arith.addf %313, %314 : vector<2x32xf32>
    %316 = math.tanh %315 : vector<2x32xf32>
    %317 = arith.mulf %312, %316 : vector<2x32xf32>
    %318 = vector.shape_cast %265 : vector<2x1xi1> to vector<2x1xi1>
    %319 = vector.broadcast %318 : vector<2x1xi1> to vector<2x32xi1>
    %320 = arith.select %319, %317, %259 : vector<2x32xi1>, vector<2x32xf32>
    %321 = vector.shape_cast %265 : vector<2x1xi1> to vector<2x1xi1>
    %322 = vector.broadcast %321 : vector<2x1xi1> to vector<2x32xi1>
    %323 = arith.select %322, %315, %262 : vector<2x32xi1>, vector<2x32xf32>
    %c5_i32 = arith.constant 5 : i32
    %324 = arith.addi %14, %c5_i32 : i32
    %325 = vector.broadcast %324 : i32 to vector<2x1xi32>
    %326 = arith.cmpi slt, %325, %13 : vector<2x1xi32>
    %327 = arith.index_cast %c5_i32 : i32 to index
    %c0_62 = arith.constant 0 : index
    %c0_63 = arith.constant 0 : index
    %328 = vector.load %arg3[%327, %c0_62, %c0_63] : memref<8x2x16xbf16, #tpu.memory_space<vmem>>, vector<1x2x16xbf16>
    %329 = vector.shape_cast %328 : vector<1x2x16xbf16> to vector<2x16xbf16>
    %cst_64 = arith.constant dense<0.000000e+00> : vector<2x128xf32>
    %330 = tpu.matmul %329, %3, %cst_64 {dimension_numbers = #tpu.dot_dimension_numbers<[1], [0], [0], [1], [0, 0, 1, 1], [], []>} : vector<2x16xbf16>, vector<16x128xbf16>, vector<2x128xf32> -> vector<2x128xf32>
    %331 = arith.truncf %320 : vector<2x32xf32> to vector<2x32xbf16>
    %cst_65 = arith.constant dense<0.000000e+00> : vector<2x128xf32>
    %332 = tpu.matmul %331, %6, %cst_65 {dimension_numbers = #tpu.dot_dimension_numbers<[1], [0], [0], [1], [0, 0, 1, 1], [], []>} : vector<2x32xbf16>, vector<32x128xbf16>, vector<2x128xf32> -> vector<2x128xf32>
    %333 = arith.truncf %294 : vector<2x32xf32> to vector<2x32xbf16>
    %cst_66 = arith.constant dense<0.000000e+00> : vector<2x128xf32>
    %334 = tpu.matmul %333, %4, %cst_66 {dimension_numbers = #tpu.dot_dimension_numbers<[1], [0], [0], [1], [0, 0, 1, 1], [], []>} : vector<2x32xbf16>, vector<32x128xbf16>, vector<2x128xf32> -> vector<2x128xf32>
    %335 = arith.addf %330, %334 : vector<2x128xf32>
    %336 = arith.addf %335, %9 : vector<2x128xf32>
    %337 = vector.extract_strided_slice %336 {offsets = [0, 0], sizes = [2, 96], strides = [1, 1]} : vector<2x128xf32> to vector<2x96xf32>
    %338 = arith.negf %337 : vector<2x96xf32>
    %339 = math.exp %338 : vector<2x96xf32>
    %cst_67 = arith.constant 1.000000e+00 : f32
    %340 = vector.broadcast %cst_67 : f32 to vector<2x96xf32>
    %341 = arith.addf %340, %339 : vector<2x96xf32>
    %342 = arith.divf %340, %341 : vector<2x96xf32>
    %343 = vector.extract_strided_slice %336 {offsets = [0, 96], sizes = [2, 32], strides = [1, 1]} : vector<2x128xf32> to vector<2x32xf32>
    %344 = math.tanh %343 : vector<2x32xf32>
    %345 = vector.extract_strided_slice %342 {offsets = [0, 0], sizes = [2, 32], strides = [1, 1]} : vector<2x96xf32> to vector<2x32xf32>
    %346 = vector.extract_strided_slice %342 {offsets = [0, 32], sizes = [2, 32], strides = [1, 1]} : vector<2x96xf32> to vector<2x32xf32>
    %347 = vector.extract_strided_slice %342 {offsets = [0, 64], sizes = [2, 32], strides = [1, 1]} : vector<2x96xf32> to vector<2x32xf32>
    %348 = arith.mulf %346, %297 : vector<2x32xf32>
    %349 = arith.mulf %345, %344 : vector<2x32xf32>
    %350 = arith.addf %348, %349 : vector<2x32xf32>
    %351 = math.tanh %350 : vector<2x32xf32>
    %352 = arith.mulf %347, %351 : vector<2x32xf32>
    %353 = vector.shape_cast %326 : vector<2x1xi1> to vector<2x1xi1>
    %354 = vector.broadcast %353 : vector<2x1xi1> to vector<2x32xi1>
    %355 = arith.select %354, %352, %294 : vector<2x32xi1>, vector<2x32xf32>
    %356 = vector.shape_cast %326 : vector<2x1xi1> to vector<2x1xi1>
    %357 = vector.broadcast %356 : vector<2x1xi1> to vector<2x32xi1>
    %358 = arith.select %357, %350, %297 : vector<2x32xi1>, vector<2x32xf32>
    %359 = arith.truncf %355 : vector<2x32xf32> to vector<2x32xbf16>
    %cst_68 = arith.constant dense<0.000000e+00> : vector<2x128xf32>
    %360 = tpu.matmul %359, %5, %cst_68 {dimension_numbers = #tpu.dot_dimension_numbers<[1], [0], [0], [1], [0, 0, 1, 1], [], []>} : vector<2x32xbf16>, vector<32x128xbf16>, vector<2x128xf32> -> vector<2x128xf32>
    %361 = arith.addf %332, %360 : vector<2x128xf32>
    %362 = arith.addf %361, %12 : vector<2x128xf32>
    %363 = vector.extract_strided_slice %362 {offsets = [0, 0], sizes = [2, 96], strides = [1, 1]} : vector<2x128xf32> to vector<2x96xf32>
    %364 = arith.negf %363 : vector<2x96xf32>
    %365 = math.exp %364 : vector<2x96xf32>
    %cst_69 = arith.constant 1.000000e+00 : f32
    %366 = vector.broadcast %cst_69 : f32 to vector<2x96xf32>
    %367 = arith.addf %366, %365 : vector<2x96xf32>
    %368 = arith.divf %366, %367 : vector<2x96xf32>
    %369 = vector.extract_strided_slice %362 {offsets = [0, 96], sizes = [2, 32], strides = [1, 1]} : vector<2x128xf32> to vector<2x32xf32>
    %370 = math.tanh %369 : vector<2x32xf32>
    %371 = vector.extract_strided_slice %368 {offsets = [0, 0], sizes = [2, 32], strides = [1, 1]} : vector<2x96xf32> to vector<2x32xf32>
    %372 = vector.extract_strided_slice %368 {offsets = [0, 32], sizes = [2, 32], strides = [1, 1]} : vector<2x96xf32> to vector<2x32xf32>
    %373 = vector.extract_strided_slice %368 {offsets = [0, 64], sizes = [2, 32], strides = [1, 1]} : vector<2x96xf32> to vector<2x32xf32>
    %374 = arith.mulf %372, %323 : vector<2x32xf32>
    %375 = arith.mulf %371, %370 : vector<2x32xf32>
    %376 = arith.addf %374, %375 : vector<2x32xf32>
    %377 = math.tanh %376 : vector<2x32xf32>
    %378 = arith.mulf %373, %377 : vector<2x32xf32>
    %379 = vector.shape_cast %326 : vector<2x1xi1> to vector<2x1xi1>
    %380 = vector.broadcast %379 : vector<2x1xi1> to vector<2x32xi1>
    %381 = arith.select %380, %378, %320 : vector<2x32xi1>, vector<2x32xf32>
    %382 = vector.shape_cast %326 : vector<2x1xi1> to vector<2x1xi1>
    %383 = vector.broadcast %382 : vector<2x1xi1> to vector<2x32xi1>
    %384 = arith.select %383, %376, %323 : vector<2x32xi1>, vector<2x32xf32>
    %c6_i32 = arith.constant 6 : i32
    %385 = arith.addi %14, %c6_i32 : i32
    %386 = vector.broadcast %385 : i32 to vector<2x1xi32>
    %387 = arith.cmpi slt, %386, %13 : vector<2x1xi32>
    %388 = arith.index_cast %c6_i32 : i32 to index
    %c0_70 = arith.constant 0 : index
    %c0_71 = arith.constant 0 : index
    %389 = vector.load %arg3[%388, %c0_70, %c0_71] : memref<8x2x16xbf16, #tpu.memory_space<vmem>>, vector<1x2x16xbf16>
    %390 = vector.shape_cast %389 : vector<1x2x16xbf16> to vector<2x16xbf16>
    %cst_72 = arith.constant dense<0.000000e+00> : vector<2x128xf32>
    %391 = tpu.matmul %390, %3, %cst_72 {dimension_numbers = #tpu.dot_dimension_numbers<[1], [0], [0], [1], [0, 0, 1, 1], [], []>} : vector<2x16xbf16>, vector<16x128xbf16>, vector<2x128xf32> -> vector<2x128xf32>
    %392 = arith.truncf %381 : vector<2x32xf32> to vector<2x32xbf16>
    %cst_73 = arith.constant dense<0.000000e+00> : vector<2x128xf32>
    %393 = tpu.matmul %392, %6, %cst_73 {dimension_numbers = #tpu.dot_dimension_numbers<[1], [0], [0], [1], [0, 0, 1, 1], [], []>} : vector<2x32xbf16>, vector<32x128xbf16>, vector<2x128xf32> -> vector<2x128xf32>
    %394 = arith.truncf %355 : vector<2x32xf32> to vector<2x32xbf16>
    %cst_74 = arith.constant dense<0.000000e+00> : vector<2x128xf32>
    %395 = tpu.matmul %394, %4, %cst_74 {dimension_numbers = #tpu.dot_dimension_numbers<[1], [0], [0], [1], [0, 0, 1, 1], [], []>} : vector<2x32xbf16>, vector<32x128xbf16>, vector<2x128xf32> -> vector<2x128xf32>
    %396 = arith.addf %391, %395 : vector<2x128xf32>
    %397 = arith.addf %396, %9 : vector<2x128xf32>
    %398 = vector.extract_strided_slice %397 {offsets = [0, 0], sizes = [2, 96], strides = [1, 1]} : vector<2x128xf32> to vector<2x96xf32>
    %399 = arith.negf %398 : vector<2x96xf32>
    %400 = math.exp %399 : vector<2x96xf32>
    %cst_75 = arith.constant 1.000000e+00 : f32
    %401 = vector.broadcast %cst_75 : f32 to vector<2x96xf32>
    %402 = arith.addf %401, %400 : vector<2x96xf32>
    %403 = arith.divf %401, %402 : vector<2x96xf32>
    %404 = vector.extract_strided_slice %397 {offsets = [0, 96], sizes = [2, 32], strides = [1, 1]} : vector<2x128xf32> to vector<2x32xf32>
    %405 = math.tanh %404 : vector<2x32xf32>
    %406 = vector.extract_strided_slice %403 {offsets = [0, 0], sizes = [2, 32], strides = [1, 1]} : vector<2x96xf32> to vector<2x32xf32>
    %407 = vector.extract_strided_slice %403 {offsets = [0, 32], sizes = [2, 32], strides = [1, 1]} : vector<2x96xf32> to vector<2x32xf32>
    %408 = vector.extract_strided_slice %403 {offsets = [0, 64], sizes = [2, 32], strides = [1, 1]} : vector<2x96xf32> to vector<2x32xf32>
    %409 = arith.mulf %407, %358 : vector<2x32xf32>
    %410 = arith.mulf %406, %405 : vector<2x32xf32>
    %411 = arith.addf %409, %410 : vector<2x32xf32>
    %412 = math.tanh %411 : vector<2x32xf32>
    %413 = arith.mulf %408, %412 : vector<2x32xf32>
    %414 = vector.shape_cast %387 : vector<2x1xi1> to vector<2x1xi1>
    %415 = vector.broadcast %414 : vector<2x1xi1> to vector<2x32xi1>
    %416 = arith.select %415, %413, %355 : vector<2x32xi1>, vector<2x32xf32>
    %417 = vector.shape_cast %387 : vector<2x1xi1> to vector<2x1xi1>
    %418 = vector.broadcast %417 : vector<2x1xi1> to vector<2x32xi1>
    %419 = arith.select %418, %411, %358 : vector<2x32xi1>, vector<2x32xf32>
    %420 = arith.truncf %416 : vector<2x32xf32> to vector<2x32xbf16>
    %cst_76 = arith.constant dense<0.000000e+00> : vector<2x128xf32>
    %421 = tpu.matmul %420, %5, %cst_76 {dimension_numbers = #tpu.dot_dimension_numbers<[1], [0], [0], [1], [0, 0, 1, 1], [], []>} : vector<2x32xbf16>, vector<32x128xbf16>, vector<2x128xf32> -> vector<2x128xf32>
    %422 = arith.addf %393, %421 : vector<2x128xf32>
    %423 = arith.addf %422, %12 : vector<2x128xf32>
    %424 = vector.extract_strided_slice %423 {offsets = [0, 0], sizes = [2, 96], strides = [1, 1]} : vector<2x128xf32> to vector<2x96xf32>
    %425 = arith.negf %424 : vector<2x96xf32>
    %426 = math.exp %425 : vector<2x96xf32>
    %cst_77 = arith.constant 1.000000e+00 : f32
    %427 = vector.broadcast %cst_77 : f32 to vector<2x96xf32>
    %428 = arith.addf %427, %426 : vector<2x96xf32>
    %429 = arith.divf %427, %428 : vector<2x96xf32>
    %430 = vector.extract_strided_slice %423 {offsets = [0, 96], sizes = [2, 32], strides = [1, 1]} : vector<2x128xf32> to vector<2x32xf32>
    %431 = math.tanh %430 : vector<2x32xf32>
    %432 = vector.extract_strided_slice %429 {offsets = [0, 0], sizes = [2, 32], strides = [1, 1]} : vector<2x96xf32> to vector<2x32xf32>
    %433 = vector.extract_strided_slice %429 {offsets = [0, 32], sizes = [2, 32], strides = [1, 1]} : vector<2x96xf32> to vector<2x32xf32>
    %434 = vector.extract_strided_slice %429 {offsets = [0, 64], sizes = [2, 32], strides = [1, 1]} : vector<2x96xf32> to vector<2x32xf32>
    %435 = arith.mulf %433, %384 : vector<2x32xf32>
    %436 = arith.mulf %432, %431 : vector<2x32xf32>
    %437 = arith.addf %435, %436 : vector<2x32xf32>
    %438 = math.tanh %437 : vector<2x32xf32>
    %439 = arith.mulf %434, %438 : vector<2x32xf32>
    %440 = vector.shape_cast %387 : vector<2x1xi1> to vector<2x1xi1>
    %441 = vector.broadcast %440 : vector<2x1xi1> to vector<2x32xi1>
    %442 = arith.select %441, %439, %381 : vector<2x32xi1>, vector<2x32xf32>
    %443 = vector.shape_cast %387 : vector<2x1xi1> to vector<2x1xi1>
    %444 = vector.broadcast %443 : vector<2x1xi1> to vector<2x32xi1>
    %445 = arith.select %444, %437, %384 : vector<2x32xi1>, vector<2x32xf32>
    %c7_i32 = arith.constant 7 : i32
    %446 = arith.addi %14, %c7_i32 : i32
    %447 = vector.broadcast %446 : i32 to vector<2x1xi32>
    %448 = arith.cmpi slt, %447, %13 : vector<2x1xi32>
    %449 = arith.index_cast %c7_i32 : i32 to index
    %c0_78 = arith.constant 0 : index
    %c0_79 = arith.constant 0 : index
    %450 = vector.load %arg3[%449, %c0_78, %c0_79] : memref<8x2x16xbf16, #tpu.memory_space<vmem>>, vector<1x2x16xbf16>
    %451 = vector.shape_cast %450 : vector<1x2x16xbf16> to vector<2x16xbf16>
    %cst_80 = arith.constant dense<0.000000e+00> : vector<2x128xf32>
    %452 = tpu.matmul %451, %3, %cst_80 {dimension_numbers = #tpu.dot_dimension_numbers<[1], [0], [0], [1], [0, 0, 1, 1], [], []>} : vector<2x16xbf16>, vector<16x128xbf16>, vector<2x128xf32> -> vector<2x128xf32>
    %453 = arith.truncf %442 : vector<2x32xf32> to vector<2x32xbf16>
    %cst_81 = arith.constant dense<0.000000e+00> : vector<2x128xf32>
    %454 = tpu.matmul %453, %6, %cst_81 {dimension_numbers = #tpu.dot_dimension_numbers<[1], [0], [0], [1], [0, 0, 1, 1], [], []>} : vector<2x32xbf16>, vector<32x128xbf16>, vector<2x128xf32> -> vector<2x128xf32>
    %455 = arith.truncf %416 : vector<2x32xf32> to vector<2x32xbf16>
    %cst_82 = arith.constant dense<0.000000e+00> : vector<2x128xf32>
    %456 = tpu.matmul %455, %4, %cst_82 {dimension_numbers = #tpu.dot_dimension_numbers<[1], [0], [0], [1], [0, 0, 1, 1], [], []>} : vector<2x32xbf16>, vector<32x128xbf16>, vector<2x128xf32> -> vector<2x128xf32>
    %457 = arith.addf %452, %456 : vector<2x128xf32>
    %458 = arith.addf %457, %9 : vector<2x128xf32>
    %459 = vector.extract_strided_slice %458 {offsets = [0, 0], sizes = [2, 96], strides = [1, 1]} : vector<2x128xf32> to vector<2x96xf32>
    %460 = arith.negf %459 : vector<2x96xf32>
    %461 = math.exp %460 : vector<2x96xf32>
    %cst_83 = arith.constant 1.000000e+00 : f32
    %462 = vector.broadcast %cst_83 : f32 to vector<2x96xf32>
    %463 = arith.addf %462, %461 : vector<2x96xf32>
    %464 = arith.divf %462, %463 : vector<2x96xf32>
    %465 = vector.extract_strided_slice %458 {offsets = [0, 96], sizes = [2, 32], strides = [1, 1]} : vector<2x128xf32> to vector<2x32xf32>
    %466 = math.tanh %465 : vector<2x32xf32>
    %467 = vector.extract_strided_slice %464 {offsets = [0, 0], sizes = [2, 32], strides = [1, 1]} : vector<2x96xf32> to vector<2x32xf32>
    %468 = vector.extract_strided_slice %464 {offsets = [0, 32], sizes = [2, 32], strides = [1, 1]} : vector<2x96xf32> to vector<2x32xf32>
    %469 = vector.extract_strided_slice %464 {offsets = [0, 64], sizes = [2, 32], strides = [1, 1]} : vector<2x96xf32> to vector<2x32xf32>
    %470 = arith.mulf %468, %419 : vector<2x32xf32>
    %471 = arith.mulf %467, %466 : vector<2x32xf32>
    %472 = arith.addf %470, %471 : vector<2x32xf32>
    %473 = math.tanh %472 : vector<2x32xf32>
    %474 = arith.mulf %469, %473 : vector<2x32xf32>
    %475 = vector.shape_cast %448 : vector<2x1xi1> to vector<2x1xi1>
    %476 = vector.broadcast %475 : vector<2x1xi1> to vector<2x32xi1>
    %477 = arith.select %476, %474, %416 : vector<2x32xi1>, vector<2x32xf32>
    %478 = vector.shape_cast %448 : vector<2x1xi1> to vector<2x1xi1>
    %479 = vector.broadcast %478 : vector<2x1xi1> to vector<2x32xi1>
    %480 = arith.select %479, %472, %419 : vector<2x32xi1>, vector<2x32xf32>
    %481 = arith.truncf %477 : vector<2x32xf32> to vector<2x32xbf16>
    %cst_84 = arith.constant dense<0.000000e+00> : vector<2x128xf32>
    %482 = tpu.matmul %481, %5, %cst_84 {dimension_numbers = #tpu.dot_dimension_numbers<[1], [0], [0], [1], [0, 0, 1, 1], [], []>} : vector<2x32xbf16>, vector<32x128xbf16>, vector<2x128xf32> -> vector<2x128xf32>
    %483 = arith.addf %454, %482 : vector<2x128xf32>
    %484 = arith.addf %483, %12 : vector<2x128xf32>
    %485 = vector.extract_strided_slice %484 {offsets = [0, 0], sizes = [2, 96], strides = [1, 1]} : vector<2x128xf32> to vector<2x96xf32>
    %486 = arith.negf %485 : vector<2x96xf32>
    %487 = math.exp %486 : vector<2x96xf32>
    %cst_85 = arith.constant 1.000000e+00 : f32
    %488 = vector.broadcast %cst_85 : f32 to vector<2x96xf32>
    %489 = arith.addf %488, %487 : vector<2x96xf32>
    %490 = arith.divf %488, %489 : vector<2x96xf32>
    %491 = vector.extract_strided_slice %484 {offsets = [0, 96], sizes = [2, 32], strides = [1, 1]} : vector<2x128xf32> to vector<2x32xf32>
    %492 = math.tanh %491 : vector<2x32xf32>
    %493 = vector.extract_strided_slice %490 {offsets = [0, 0], sizes = [2, 32], strides = [1, 1]} : vector<2x96xf32> to vector<2x32xf32>
    %494 = vector.extract_strided_slice %490 {offsets = [0, 32], sizes = [2, 32], strides = [1, 1]} : vector<2x96xf32> to vector<2x32xf32>
    %495 = vector.extract_strided_slice %490 {offsets = [0, 64], sizes = [2, 32], strides = [1, 1]} : vector<2x96xf32> to vector<2x32xf32>
    %496 = arith.mulf %494, %445 : vector<2x32xf32>
    %497 = arith.mulf %493, %492 : vector<2x32xf32>
    %498 = arith.addf %496, %497 : vector<2x32xf32>
    %499 = math.tanh %498 : vector<2x32xf32>
    %500 = arith.mulf %495, %499 : vector<2x32xf32>
    %501 = vector.shape_cast %448 : vector<2x1xi1> to vector<2x1xi1>
    %502 = vector.broadcast %501 : vector<2x1xi1> to vector<2x32xi1>
    %503 = arith.select %502, %500, %442 : vector<2x32xi1>, vector<2x32xf32>
    %504 = vector.shape_cast %448 : vector<2x1xi1> to vector<2x1xi1>
    %505 = vector.broadcast %504 : vector<2x1xi1> to vector<2x32xi1>
    %506 = arith.select %505, %498, %445 : vector<2x32xi1>, vector<2x32xf32>
    %c8_i32_86 = arith.constant 8 : i32
    %c0_87 = arith.constant 0 : index
    %c0_88 = arith.constant 0 : index
    %507 = vector.load %arg13[%c0_87, %c0_88] : memref<2x32xf32, #tpu.memory_space<vmem>>, vector<2x32xf32>
    tpu.vector_store %arg13[%c0_87, %c0_88], %477 {strides = array<i32>} : memref<2x32xf32, #tpu.memory_space<vmem>>, vector<2x32xf32>,
    %c0_89 = arith.constant 0 : index
    %c0_90 = arith.constant 0 : index
    %508 = vector.load %arg14[%c0_89, %c0_90] : memref<2x32xf32, #tpu.memory_space<vmem>>, vector<2x32xf32>
    tpu.vector_store %arg14[%c0_89, %c0_90], %480 {strides = array<i32>} : memref<2x32xf32, #tpu.memory_space<vmem>>, vector<2x32xf32>,
    %c0_91 = arith.constant 0 : index
    %c0_92 = arith.constant 0 : index
    %509 = vector.load %arg15[%c0_91, %c0_92] : memref<2x32xf32, #tpu.memory_space<vmem>>, vector<2x32xf32>
    tpu.vector_store %arg15[%c0_91, %c0_92], %503 {strides = array<i32>} : memref<2x32xf32, #tpu.memory_space<vmem>>, vector<2x32xf32>,
    %c0_93 = arith.constant 0 : index
    %c0_94 = arith.constant 0 : index
    %510 = vector.load %arg16[%c0_93, %c0_94] : memref<2x32xf32, #tpu.memory_space<vmem>>, vector<2x32xf32>
    tpu.vector_store %arg16[%c0_93, %c0_94], %506 {strides = array<i32>} : memref<2x32xf32, #tpu.memory_space<vmem>>, vector<2x32xf32>,
    %c0_i32_95 = arith.constant 0 : i32
    %511 = arith.cmpi eq, %arg1, %c0_i32_95 : i32
    %512 = arith.extui %511 : i1 to i32
    %c0_i32_96 = arith.constant 0 : i32
    %513 = arith.cmpi ne, %512, %c0_i32_96 : i32
    scf.if %513 {
      %514 = arith.truncf %503 : vector<2x32xf32> to vector<2x32xbf16>
      %c0_97 = arith.constant 0 : index
      %c0_98 = arith.constant 0 : index
      %515 = vector.load %arg10[%c0_97, %c0_98] : memref<32x128xbf16, #tpu.memory_space<vmem>>, vector<32x128xbf16>
      %cst_99 = arith.constant dense<0.000000e+00> : vector<2x128xf32>
      %516 = tpu.matmul %514, %515, %cst_99 {dimension_numbers = #tpu.dot_dimension_numbers<[1], [0], [0], [1], [0, 0, 1, 1], [], []>} : vector<2x32xbf16>, vector<32x128xbf16>, vector<2x128xf32> -> vector<2x128xf32>
      %c0_100 = arith.constant 0 : index
      %c0_101 = arith.constant 0 : index
      %517 = vector.load %arg11[%c0_100, %c0_101] : memref<1x128xf32, #tpu.memory_space<vmem>>, vector<1x128xf32>
      %518 = vector.broadcast %517 : vector<1x128xf32> to vector<2x128xf32>
      %519 = arith.addf %516, %518 : vector<2x128xf32>
      %c0_102 = arith.constant 0 : index
      %c0_103 = arith.constant 0 : index
      %520 = vector.load %arg12[%c0_102, %c0_103] : memref<2x128xf32, #tpu.memory_space<vmem>>, vector<2x128xf32>
      tpu.vector_store %arg12[%c0_102, %c0_103], %519 {strides = array<i32>} : memref<2x128xf32, #tpu.memory_space<vmem>>, vector<2x128xf32>,
    } else {
    }
    return
  }
  func.func @transform_0(%arg0: i32, %arg1: i32) -> (i32, i32) {
    %c0_i32 = arith.constant 0 : i32
    %c0_i32_0 = arith.constant 0 : i32
    return %arg0, %c0_i32 : i32, i32
  }
  func.func @transform_1(%arg0: i32, %arg1: i32) -> (i32, i32, i32) {
    %c0_i32 = arith.constant 0 : i32
    %c0_i32_0 = arith.constant 0 : i32
    return %arg1, %arg0, %c0_i32 : i32, i32, i32
  }
  func.func @transform_2(%arg0: i32, %arg1: i32) -> (i32, i32) {
    %c0_i32 = arith.constant 0 : i32
    %c0_i32_0 = arith.constant 0 : i32
    %c0_i32_1 = arith.constant 0 : i32
    return %c0_i32, %c0_i32_0 : i32, i32
  }
  func.func @transform_3(%arg0: i32, %arg1: i32) -> (i32, i32) {
    %c0_i32 = arith.constant 0 : i32
    %c0_i32_0 = arith.constant 0 : i32
    %c0_i32_1 = arith.constant 0 : i32
    return %c0_i32, %c0_i32_0 : i32, i32
  }
  func.func @transform_4(%arg0: i32, %arg1: i32) -> (i32, i32) {
    %c0_i32 = arith.constant 0 : i32
    %c0_i32_0 = arith.constant 0 : i32
    %c0_i32_1 = arith.constant 0 : i32
    return %c0_i32, %c0_i32_0 : i32, i32
  }
  func.func @transform_5(%arg0: i32, %arg1: i32) -> (i32, i32) {
    %c0_i32 = arith.constant 0 : i32
    %c0_i32_0 = arith.constant 0 : i32
    %c0_i32_1 = arith.constant 0 : i32
    return %c0_i32, %c0_i32_0 : i32, i32
  }
  func.func @transform_6(%arg0: i32, %arg1: i32) -> (i32, i32) {
    %c0_i32 = arith.constant 0 : i32
    %c0_i32_0 = arith.constant 0 : i32
    %c0_i32_1 = arith.constant 0 : i32
    return %c0_i32, %c0_i32_0 : i32, i32
  }
  func.func @transform_7(%arg0: i32, %arg1: i32) -> (i32, i32) {
    %c0_i32 = arith.constant 0 : i32
    %c0_i32_0 = arith.constant 0 : i32
    %c0_i32_1 = arith.constant 0 : i32
    return %c0_i32, %c0_i32_0 : i32, i32
  }
  func.func @transform_8(%arg0: i32, %arg1: i32) -> (i32, i32) {
    %c0_i32 = arith.constant 0 : i32
    %c0_i32_0 = arith.constant 0 : i32
    %c0_i32_1 = arith.constant 0 : i32
    return %c0_i32, %c0_i32_0 : i32, i32
  }
  func.func @transform_9(%arg0: i32, %arg1: i32) -> (i32, i32) {
    %c0_i32 = arith.constant 0 : i32
    %c0_i32_0 = arith.constant 0 : i32
    %c0_i32_1 = arith.constant 0 : i32
    return %c0_i32, %c0_i32_0 : i32, i32
  }
  func.func @transform_10(%arg0: i32, %arg1: i32) -> (i32, i32) {
    %c0_i32 = arith.constant 0 : i32
    %c0_i32_0 = arith.constant 0 : i32
    return %arg0, %c0_i32 : i32, i32
  }
}

</mosaic_0001>

<llo_original>
// kernel: simple_lstm_forward.1
$region0: #{simple_lstm_forward.1}
  #allocation0 [shape = 'u32[]', space=smem, size = 0x4, offset = 0x4, fixed_abs, tag = 'smem constant byte address 0x4 - core index']
  #allocation1 [shape = 'u32[72,128]{1,0:T(1,128)}', space=vmem, size = 0x9000, scoped, tag = 'internal scratch']
  #allocation2 [shape = 'f32[2,32]{1,0:T(2,128)}', space=vmem, size = 0x400, scoped, tag = 'scratch operand']
  #allocation3 [shape = 'f32[2,32]{1,0:T(2,128)}', space=vmem, size = 0x400, scoped, tag = 'scratch operand']
  #allocation4 [shape = 'f32[2,32]{1,0:T(2,128)}', space=vmem, size = 0x400, scoped, tag = 'scratch operand']
  #allocation5 [shape = 'f32[2,32]{1,0:T(2,128)}', space=vmem, size = 0x400, scoped, tag = 'scratch operand']
  %s0 = inlined_call_operand.vmem [shape: s32[2,1], index: 0, kind: input, shape index: {}]
  %s1 = inlined_call_operand.vmem [shape: bf16[8,2,16], index: 1, kind: input, shape index: {}]
  %s2 = inlined_call_operand.vmem [shape: bf16[16,128], index: 2, kind: input, shape index: {}]
  %s3 = inlined_call_operand.vmem [shape: bf16[32,128], index: 3, kind: input, shape index: {}]
  %s4 = inlined_call_operand.vmem [shape: bf16[32,128], index: 4, kind: input, shape index: {}]
  %s5 = inlined_call_operand.vmem [shape: bf16[32,128], index: 5, kind: input, shape index: {}]
  %s6 = inlined_call_operand.vmem [shape: f32[1,128], index: 6, kind: input, shape index: {}]
  %s7 = inlined_call_operand.vmem [shape: f32[1,128], index: 7, kind: input, shape index: {}]
  %s8 = inlined_call_operand.vmem [shape: bf16[32,128], index: 8, kind: input, shape index: {}]
  %s9 = inlined_call_operand.vmem [shape: f32[1,128], index: 9, kind: input, shape index: {}]
  %s10 = inlined_call_operand.hbm [shape: f32[2,128], index: 10, kind: output, shape index: {}]
  %s11 = sld [smem:[#allocation0]]
  $region58: #{simple_lstm_forward.1} parent=0
    _
  %s13 = ssub.s32 1, %s11
  %s14 = scalar_select 0, %s13, %s11
  $region1: #{simple_lstm_forward.1} parent=0
    #allocation6 [shape = 'u8[1024]{0}', space=vmem, size = 0x400, scoped, tag = 'output window, operand 0, single buffered']
    #allocation7 [shape = 's32[1]{0}', space=sflag, size = 0x4, scoped, tag = 'scoped memory for simple_lstm_forward.1']
    %15 = vsyncpa [#allocation7], 0
    // Predicated region
    $region2: #{simple_lstm_forward.1} parent=1 // pred_check
      _
    $region3: #{simple_lstm_forward.1} parent=1 // pred_check_branch
      %17 = sbr.rel (0) target = $region5
    $region4: #{simple_lstm_forward.1} parent=1 // pred_region
      _
    $region5: #{simple_lstm_forward.1} parent=1 // pred_fallthru
      _
    // Predicated region
    $region6: #{simple_lstm_forward.1} parent=1 // pred_check
      _
    $region7: #{simple_lstm_forward.1} parent=1 // pred_check_branch
      %19 = sbr.rel (0) target = $region9
    $region8: #{simple_lstm_forward.1} parent=1 // pred_region
      _
    $region9: #{simple_lstm_forward.1} parent=1 // pred_fallthru
      _
    // Predicated region
    $region10: #{simple_lstm_forward.1} parent=1 // pred_check
      _
    $region11: #{simple_lstm_forward.1} parent=1 // pred_check_branch
      %21 = sbr.rel (0) target = $region13
    $region12: #{simple_lstm_forward.1} parent=1 // pred_region
      _
    $region13: #{simple_lstm_forward.1} parent=1 // pred_fallthru
      _
    // Predicated region
    $region14: #{simple_lstm_forward.1} parent=1 // pred_check
      _
    $region15: #{simple_lstm_forward.1} parent=1 // pred_check_branch
      %23 = sbr.rel (0) target = $region17
    $region16: #{simple_lstm_forward.1} parent=1 // pred_region
      _
    $region17: #{simple_lstm_forward.1} parent=1 // pred_fallthru
      _
    // Predicated region
    $region18: #{simple_lstm_forward.1} parent=1 // pred_check
      _
    $region19: #{simple_lstm_forward.1} parent=1 // pred_check_branch
      %25 = sbr.rel (0) target = $region21
    $region20: #{simple_lstm_forward.1} parent=1 // pred_region
      _
    $region21: #{simple_lstm_forward.1} parent=1 // pred_fallthru
      _
    // Predicated region
    $region22: #{simple_lstm_forward.1} parent=1 // pred_check
      _
    $region23: #{simple_lstm_forward.1} parent=1 // pred_check_branch
      %27 = sbr.rel (0) target = $region25
    $region24: #{simple_lstm_forward.1} parent=1 // pred_region
      _
    $region25: #{simple_lstm_forward.1} parent=1 // pred_fallthru
      _
    // Predicated region
    $region26: #{simple_lstm_forward.1} parent=1 // pred_check
      _
    $region27: #{simple_lstm_forward.1} parent=1 // pred_check_branch
      %29 = sbr.rel (0) target = $region29
    $region28: #{simple_lstm_forward.1} parent=1 // pred_region
      _
    $region29: #{simple_lstm_forward.1} parent=1 // pred_fallthru
      _
    // Predicated region
    $region30: #{simple_lstm_forward.1} parent=1 // pred_check
      _
    $region31: #{simple_lstm_forward.1} parent=1 // pred_check_branch
      %31 = sbr.rel (0) target = $region33
    $region32: #{simple_lstm_forward.1} parent=1 // pred_region
      _
    $region33: #{simple_lstm_forward.1} parent=1 // pred_fallthru
      _
    // Predicated region
    $region34: #{simple_lstm_forward.1} parent=1 // pred_check
      _
    $region35: #{simple_lstm_forward.1} parent=1 // pred_check_branch
      %33 = sbr.rel (0) target = $region37
    $region36: #{simple_lstm_forward.1} parent=1 // pred_region
      _
    $region37: #{simple_lstm_forward.1} parent=1 // pred_fallthru
      _
    // Predicated region
    $region38: #{simple_lstm_forward.1} parent=1 // pred_check
      _
    $region39: #{simple_lstm_forward.1} parent=1 // pred_check_branch
      %35 = sbr.rel (0) target = $region41
    $region40: #{simple_lstm_forward.1} parent=1 // pred_region
      _
    $region41: #{simple_lstm_forward.1} parent=1 // pred_fallthru
      _
    %p37 = scmp.eq.s32.totalorder 0, 0
    // Predicated region
    $region42: #{simple_lstm_forward.1} parent=1 // pred_check
      %p38 = pneg %p37
    $region43: #{simple_lstm_forward.1} parent=1 // pred_check_branch
      %40 = sbr.rel (%p38) target = $region45
    $region44: #{simple_lstm_forward.1} parent=1 // pred_region
      %vm41 = vcmask 254976
      %42 = vst.msk [vmem:[#allocation2] sm:$0x3] %vm41, 0.0
      %43 = vst.msk [vmem:[#allocation3] sm:$0x3] %vm41, 0.0
      %44 = vst.msk [vmem:[#allocation4] sm:$0x3] %vm41, 0.0
      %45 = vst.msk [vmem:[#allocation5] sm:$0x3] %vm41, 0.0
    $region45: #{simple_lstm_forward.1} parent=1 // pred_fallthru
      _
    %v46 = vld [vmem:[%s2] sm:$0xf]
    %v47 = vld [vmem:[%s2 + $0x4] sm:$0xf]
    %v48 = vld [vmem:[%s3] sm:$0xf]
    %v49 = vld [vmem:[%s3 + $0x4] sm:$0xf]
    %v50 = vld [vmem:[%s3 + $0x8] sm:$0xf]
    %v51 = vld [vmem:[%s3 + $0xc] sm:$0xf]
    %v52 = vld [vmem:[%s4] sm:$0xf]
    %v53 = vld [vmem:[%s4 + $0x4] sm:$0xf]
    %v54 = vld [vmem:[%s4 + $0x8] sm:$0xf]
    %v55 = vld [vmem:[%s4 + $0xc] sm:$0xf]
    %v56 = vld [vmem:[%s5] sm:$0xf]
    %v57 = vld [vmem:[%s5 + $0x4] sm:$0xf]
    %v58 = vld [vmem:[%s5 + $0x8] sm:$0xf]
    %v59 = vld [vmem:[%s5 + $0xc] sm:$0xf]
    %v60 = vld [vmem:[%s6] sm:$0x1]
    %v62 = vperm.slane %v60, 0
    %v64 = vld [vmem:[%s7] sm:$0x1]
    %v66 = vperm.slane %v64, 0
    %v68 = vld [vmem:[%s0] sm:$0x3]
    %s69 = smul.u32 0, 8
    %v70 = vld [vmem:[#allocation2] sm:$0x3]
    %v71 = vld [vmem:[#allocation3] sm:$0x3]
    %v72 = vld [vmem:[#allocation4] sm:$0x3]
    %v73 = vld [vmem:[#allocation5] sm:$0x3]
    %v74 = vstv %s69
    %vm75 = vcmp.lt.s32.totalorder %v74, %v68
    %v76 = vld [vmem:[%s1] sm:$0x1]
    %v77 = vpack.c.bf16 %v72, %v72
    %v78 = vpack.c.bf16 %v70, %v70
    %v83 = vunpack.c.l.b16 %v48
    %v84 = vunpack.c.l.b16 %v49
    %v85 = vunpack.c.l.b16 %v50
    %v86 = vunpack.c.l.b16 %v51
    %v87 = vpack.c.b16 %v84, %v83
    %v88 = vpack.c.b16 %v86, %v85
    %vm91 = vcmask 261120
    %v93 = vsel %vm91, %v78, 0
    %95 = vmatpush.bf16.msra.mxu0 0
    %96 = vmatpush.bf16.msra.mxu0 0
    %97 = vmatpush.bf16.msra.mxu0 0
    %98 = vmatpush.bf16.msra.mxu0 0
    %99 = vmatpush.bf16.msra.mxu0 0
    %100 = vmatpush.bf16.msra.mxu0 0
    %101 = vmatpush.bf16.msra.mxu0 %v88
    %102 = vmatpush.bf16.msra.mxu0 %v87
    %103 = vmatmul.bf16.gmra.mxu0 %v93
    %v104 = vpop.f32.mrf.mxu0
    %v105 = vadd.f32 0.0, %v104
    %v106 = vpop.f32.mrf.mxu0
    %107 = vdwg.mxu0
    %v110 = vunpack.c.l.b16 %v46
    %v111 = vunpack.c.l.b16 %v47
    %v112 = vpack.c.b16 %v111, %v110
    %vm114 = vcmask 130048
    %v116 = vsel %vm114, %v76, 0
    %118 = vmatpush.bf16.msra.mxu0 0
    %119 = vmatpush.bf16.msra.mxu0 0
    %120 = vmatpush.bf16.msra.mxu0 0
    %121 = vmatpush.bf16.msra.mxu0 0
    %122 = vmatpush.bf16.msra.mxu0 0
    %123 = vmatpush.bf16.msra.mxu0 0
    %124 = vmatpush.bf16.msra.mxu0 0
    %125 = vmatpush.bf16.msra.mxu0 %v112
    %126 = vmatmul.bf16.gmra.mxu0 %v116
    %v127 = vpop.f32.mrf.mxu0
    %v128 = vadd.f32 %v105, %v127
    %v129 = vpop.f32.mrf.mxu0
    %130 = vdwg.mxu0
    %v131 = vadd.f32 %v128, %v62
    %v132 = vxor.u32 %v131, 2147483648
    %v133 = vmul.f32 %v132, 1.442695
    %v134 = vpow.pop %v133
    %v135 = vadd.f32 %v134, 1.0
    %v136 = vrcp.pop %v135
    %v137 = vmul.f32 %v135, %v136
    %v138 = vsub.f32 1.0, %v137
    %v139 = vmul.f32 %v136, %v138
    %v140 = vadd.f32 %v136, %v139
    %vm141 = vweird.f32 %v135
    %vm142 = vweird.f32 %v136
    %vm143 = vmor %vm141, %vm142
    %v144 = vsel %vm143, %v136, %v140
    %v145 = vand.u32 2147483647, %v135
    %vm146 = vcmp.eq.f32.partialorder %v145, 8.507059e+37
    %v147 = vand.u32 %v135, 2147483648
    %v148 = vor.u32 1.1754944e-38, %v147
    %v149 = vsel %vm146, %v148, %v144
    %v150 = vmul.f32 1.0, %v149
    %v151 = vtanh.pop %v131
    %153 = vrot.lane.b32.xlu0 %v71, 32
    %v154 = vpop.permute.xlu0 %153
    %v156 = vmul.f32 %v150, %v154
    %158 = vrot.lane.b32.xlu0 %v151, 32
    %v159 = vpop.permute.xlu0 %158
    %v161 = vmul.f32 %v150, %v159
    %163 = vrot.lane.b32.xlu0 %v161, 32
    %v164 = vpop.permute.xlu0 %163
    %v166 = vadd.f32 %v156, %v164
    %v167 = vtanh.pop %v166
    %169 = vrot.lane.b32.xlu0 %v167, 32
    %v170 = vpop.permute.xlu0 %169
    %v172 = vmul.f32 %v150, %v170
    %v173 = vsel %vm75, 1, 0
    %174 = vset.pattern.permute.xlu0 0
    %175 = vperm.xlu0 %174, %v173
    %v176 = vpop.permute.xlu0 %175
    %vm177 = vcmp.eq.s32.totalorder %v176, 1
    %179 = vrot.lane.b32.xlu0 %v70, 64
    %v180 = vpop.permute.xlu0 %179
    %v182 = vsel %vm177, %v172, %v180
    %v183 = vsel %vm177, %v166, %v154
    %v184 = vpack.c.bf16 %v182, %v182
    %186 = vrot.lane.b32.xlu0 %v184, 64
    %v187 = vpop.permute.xlu0 %186
    %v192 = vunpack.c.l.b16 %v52
    %v193 = vunpack.c.l.b16 %v53
    %v194 = vunpack.c.l.b16 %v54
    %v195 = vunpack.c.l.b16 %v55
    %v196 = vpack.c.b16 %v193, %v192
    %v197 = vpack.c.b16 %v195, %v194
    %v201 = vsel %vm91, %v187, 0
    %203 = vmatpush.bf16.msra.mxu0 0
    %204 = vmatpush.bf16.msra.mxu0 0
    %205 = vmatpush.bf16.msra.mxu0 0
    %206 = vmatpush.bf16.msra.mxu0 0
    %207 = vmatpush.bf16.msra.mxu0 0
    %208 = vmatpush.bf16.msra.mxu0 0
    %209 = vmatpush.bf16.msra.mxu0 %v197
    %210 = vmatpush.bf16.msra.mxu0 %v196
    %211 = vmatmul.bf16.gmra.mxu0 %v201
    %v212 = vpop.f32.mrf.mxu0
    %v213 = vadd.f32 0.0, %v212
    %v214 = vpop.f32.mrf.mxu0
    %215 = vdwg.mxu0
    %v220 = vunpack.c.l.b16 %v56
    %v221 = vunpack.c.l.b16 %v57
    %v222 = vunpack.c.l.b16 %v58
    %v223 = vunpack.c.l.b16 %v59
    %v224 = vpack.c.b16 %v221, %v220
    %v225 = vpack.c.b16 %v223, %v222
    %v229 = vsel %vm91, %v77, 0
    %231 = vmatpush.bf16.msra.mxu0 0
    %232 = vmatpush.bf16.msra.mxu0 0
    %233 = vmatpush.bf16.msra.mxu0 0
    %234 = vmatpush.bf16.msra.mxu0 0
    %235 = vmatpush.bf16.msra.mxu0 0
    %236 = vmatpush.bf16.msra.mxu0 0
    %237 = vmatpush.bf16.msra.mxu0 %v225
    %238 = vmatpush.bf16.msra.mxu0 %v224
    %239 = vmatmul.bf16.gmra.mxu0 %v229
    %v240 = vpop.f32.mrf.mxu0
    %v241 = vadd.f32 %v213, %v240
    %v242 = vpop.f32.mrf.mxu0
    %243 = vdwg.mxu0
    %v244 = vadd.f32 %v241, %v66
    %v245 = vxor.u32 %v244, 2147483648
    %v246 = vmul.f32 %v245, 1.442695
    %v247 = vpow.pop %v246
    %v248 = vadd.f32 %v247, 1.0
    %v249 = vrcp.pop %v248
    %v250 = vmul.f32 %v248, %v249
    %v251 = vsub.f32 1.0, %v250
    %v252 = vmul.f32 %v249, %v251
    %v253 = vadd.f32 %v249, %v252
    %vm254 = vweird.f32 %v248
    %vm255 = vweird.f32 %v249
    %vm256 = vmor %vm254, %vm255
    %v257 = vsel %vm256, %v249, %v253
    %v258 = vand.u32 2147483647, %v248
    %vm259 = vcmp.eq.f32.partialorder %v258, 8.507059e+37
    %v260 = vand.u32 %v248, 2147483648
    %v261 = vor.u32 1.1754944e-38, %v260
    %v262 = vsel %vm259, %v261, %v257
    %v263 = vmul.f32 1.0, %v262
    %v264 = vtanh.pop %v244
    %266 = vrot.lane.b32.xlu0 %v73, 32
    %v267 = vpop.permute.xlu0 %266
    %v269 = vmul.f32 %v263, %v267
    %271 = vrot.lane.b32.xlu0 %v264, 32
    %v272 = vpop.permute.xlu0 %271
    %v274 = vmul.f32 %v263, %v272
    %276 = vrot.lane.b32.xlu0 %v274, 32
    %v277 = vpop.permute.xlu0 %276
    %v279 = vadd.f32 %v269, %v277
    %v280 = vtanh.pop %v279
    %282 = vrot.lane.b32.xlu0 %v280, 32
    %v283 = vpop.permute.xlu0 %282
    %v285 = vmul.f32 %v263, %v283
    %287 = vrot.lane.b32.xlu0 %v72, 64
    %v288 = vpop.permute.xlu0 %287
    %v290 = vsel %vm177, %v285, %v288
    %v291 = vsel %vm177, %v279, %v267
    %s292 = sadd.s32 %s69, 1
    %v293 = vstv %s292
    %vm294 = vcmp.lt.s32.totalorder %v293, %v68
    %s295 = scalar_lea.vmem %s1, 1
    %v296 = vld [vmem:[%s295] sm:$0x1]
    %v297 = vpack.c.bf16 %v290, %v290
    %298 = vmatpush.bf16.msra.mxu0 0
    %299 = vmatpush.bf16.msra.mxu0 0
    %300 = vmatpush.bf16.msra.mxu0 0
    %301 = vmatpush.bf16.msra.mxu0 0
    %302 = vmatpush.bf16.msra.mxu0 0
    %303 = vmatpush.bf16.msra.mxu0 0
    %304 = vmatpush.bf16.msra.mxu0 %v88
    %305 = vmatpush.bf16.msra.mxu0 %v87
    %306 = vmatmul.bf16.gmra.mxu0 %v201
    %v307 = vpop.f32.mrf.mxu0
    %v308 = vadd.f32 0.0, %v307
    %v309 = vpop.f32.mrf.mxu0
    %310 = vdwg.mxu0
    %v312 = vsel %vm114, %v296, 0
    %314 = vmatpush.bf16.msra.mxu0 0
    %315 = vmatpush.bf16.msra.mxu0 0
    %316 = vmatpush.bf16.msra.mxu0 0
    %317 = vmatpush.bf16.msra.mxu0 0
    %318 = vmatpush.bf16.msra.mxu0 0
    %319 = vmatpush.bf16.msra.mxu0 0
    %320 = vmatpush.bf16.msra.mxu0 0
    %321 = vmatpush.bf16.msra.mxu0 %v112
    %322 = vmatmul.bf16.gmra.mxu0 %v312
    %v323 = vpop.f32.mrf.mxu0
    %v324 = vadd.f32 %v308, %v323
    %v325 = vpop.f32.mrf.mxu0
    %326 = vdwg.mxu0
    %v327 = vadd.f32 %v324, %v62
    %v328 = vxor.u32 %v327, 2147483648
    %v329 = vmul.f32 %v328, 1.442695
    %v330 = vpow.pop %v329
    %v331 = vadd.f32 %v330, 1.0
    %v332 = vrcp.pop %v331
    %v333 = vmul.f32 %v331, %v332
    %v334 = vsub.f32 1.0, %v333
    %v335 = vmul.f32 %v332, %v334
    %v336 = vadd.f32 %v332, %v335
    %vm337 = vweird.f32 %v331
    %vm338 = vweird.f32 %v332
    %vm339 = vmor %vm337, %vm338
    %v340 = vsel %vm339, %v332, %v336
    %v341 = vand.u32 2147483647, %v331
    %vm342 = vcmp.eq.f32.partialorder %v341, 8.507059e+37
    %v343 = vand.u32 %v331, 2147483648
    %v344 = vor.u32 1.1754944e-38, %v343
    %v345 = vsel %vm342, %v344, %v340
    %v346 = vmul.f32 1.0, %v345
    %v347 = vtanh.pop %v327
    %v348 = vmul.f32 %v346, %v183
    %350 = vrot.lane.b32.xlu0 %v347, 32
    %v351 = vpop.permute.xlu0 %350
    %v353 = vmul.f32 %v346, %v351
    %355 = vrot.lane.b32.xlu0 %v353, 32
    %v356 = vpop.permute.xlu0 %355
    %v358 = vadd.f32 %v348, %v356
    %v359 = vtanh.pop %v358
    %361 = vrot.lane.b32.xlu0 %v359, 32
    %v362 = vpop.permute.xlu0 %361
    %v364 = vmul.f32 %v346, %v362
    %v365 = vsel %vm294, 1, 0
    %366 = vset.pattern.permute.xlu0 0
    %367 = vperm.xlu0 %366, %v365
    %v368 = vpop.permute.xlu0 %367
    %vm369 = vcmp.eq.s32.totalorder %v368, 1
    %v370 = vsel %vm369, %v364, %v182
    %v371 = vsel %vm369, %v358, %v183
    %v372 = vpack.c.bf16 %v370, %v370
    %374 = vrot.lane.b32.xlu0 %v372, 64
    %v375 = vpop.permute.xlu0 %374
    %v377 = vsel %vm91, %v375, 0
    %379 = vmatpush.bf16.msra.mxu0 0
    %380 = vmatpush.bf16.msra.mxu0 0
    %381 = vmatpush.bf16.msra.mxu0 0
    %382 = vmatpush.bf16.msra.mxu0 0
    %383 = vmatpush.bf16.msra.mxu0 0
    %384 = vmatpush.bf16.msra.mxu0 0
    %385 = vmatpush.bf16.msra.mxu0 %v197
    %386 = vmatpush.bf16.msra.mxu0 %v196
    %387 = vmatmul.bf16.gmra.mxu0 %v377
    %v388 = vpop.f32.mrf.mxu0
    %v389 = vadd.f32 0.0, %v388
    %v390 = vpop.f32.mrf.mxu0
    %391 = vdwg.mxu0
    %393 = vrot.lane.b32.xlu0 %v297, 64
    %v394 = vpop.permute.xlu0 %393
    %v396 = vsel %vm91, %v394, 0
    %398 = vmatpush.bf16.msra.mxu0 0
    %399 = vmatpush.bf16.msra.mxu0 0
    %400 = vmatpush.bf16.msra.mxu0 0
    %401 = vmatpush.bf16.msra.mxu0 0
    %402 = vmatpush.bf16.msra.mxu0 0
    %403 = vmatpush.bf16.msra.mxu0 0
    %404 = vmatpush.bf16.msra.mxu0 %v225
    %405 = vmatpush.bf16.msra.mxu0 %v224
    %406 = vmatmul.bf16.gmra.mxu0 %v396
    %v407 = vpop.f32.mrf.mxu0
    %v408 = vadd.f32 %v389, %v407
    %v409 = vpop.f32.mrf.mxu0
    %410 = vdwg.mxu0
    %v411 = vadd.f32 %v408, %v66
    %v412 = vxor.u32 %v411, 2147483648
    %v413 = vmul.f32 %v412, 1.442695
    %v414 = vpow.pop %v413
    %v415 = vadd.f32 %v414, 1.0
    %v416 = vrcp.pop %v415
    %v417 = vmul.f32 %v415, %v416
    %v418 = vsub.f32 1.0, %v417
    %v419 = vmul.f32 %v416, %v418
    %v420 = vadd.f32 %v416, %v419
    %vm421 = vweird.f32 %v415
    %vm422 = vweird.f32 %v416
    %vm423 = vmor %vm421, %vm422
    %v424 = vsel %vm423, %v416, %v420
    %v425 = vand.u32 2147483647, %v415
    %vm426 = vcmp.eq.f32.partialorder %v425, 8.507059e+37
    %v427 = vand.u32 %v415, 2147483648
    %v428 = vor.u32 1.1754944e-38, %v427
    %v429 = vsel %vm426, %v428, %v424
    %v430 = vmul.f32 1.0, %v429
    %v431 = vtanh.pop %v411
    %v432 = vmul.f32 %v430, %v291
    %434 = vrot.lane.b32.xlu0 %v431, 32
    %v435 = vpop.permute.xlu0 %434
    %v437 = vmul.f32 %v430, %v435
    %439 = vrot.lane.b32.xlu0 %v437, 32
    %v440 = vpop.permute.xlu0 %439
    %v442 = vadd.f32 %v432, %v440
    %v443 = vtanh.pop %v442
    %445 = vrot.lane.b32.xlu0 %v443, 32
    %v446 = vpop.permute.xlu0 %445
    %v448 = vmul.f32 %v430, %v446
    %v449 = vsel %vm369, %v448, %v290
    %v450 = vsel %vm369, %v442, %v291
    %s451 = sadd.s32 %s69, 2
    %v452 = vstv %s451
    %vm453 = vcmp.lt.s32.totalorder %v452, %v68
    %s454 = scalar_lea.vmem %s1, 2
    %v455 = vld [vmem:[%s454] sm:$0x1]
    %v456 = vpack.c.bf16 %v449, %v449
    %457 = vmatpush.bf16.msra.mxu0 0
    %458 = vmatpush.bf16.msra.mxu0 0
    %459 = vmatpush.bf16.msra.mxu0 0
    %460 = vmatpush.bf16.msra.mxu0 0
    %461 = vmatpush.bf16.msra.mxu0 0
    %462 = vmatpush.bf16.msra.mxu0 0
    %463 = vmatpush.bf16.msra.mxu0 %v88
    %464 = vmatpush.bf16.msra.mxu0 %v87
    %465 = vmatmul.bf16.gmra.mxu0 %v377
    %v466 = vpop.f32.mrf.mxu0
    %v467 = vadd.f32 0.0, %v466
    %v468 = vpop.f32.mrf.mxu0
    %469 = vdwg.mxu0
    %v471 = vsel %vm114, %v455, 0
    %473 = vmatpush.bf16.msra.mxu0 0
    %474 = vmatpush.bf16.msra.mxu0 0
    %475 = vmatpush.bf16.msra.mxu0 0
    %476 = vmatpush.bf16.msra.mxu0 0
    %477 = vmatpush.bf16.msra.mxu0 0
    %478 = vmatpush.bf16.msra.mxu0 0
    %479 = vmatpush.bf16.msra.mxu0 0
    %480 = vmatpush.bf16.msra.mxu0 %v112
    %481 = vmatmul.bf16.gmra.mxu0 %v471
    %v482 = vpop.f32.mrf.mxu0
    %v483 = vadd.f32 %v467, %v482
    %v484 = vpop.f32.mrf.mxu0
    %485 = vdwg.mxu0
    %v486 = vadd.f32 %v483, %v62
    %v487 = vxor.u32 %v486, 2147483648
    %v488 = vmul.f32 %v487, 1.442695
    %v489 = vpow.pop %v488
    %v490 = vadd.f32 %v489, 1.0
    %v491 = vrcp.pop %v490
    %v492 = vmul.f32 %v490, %v491
    %v493 = vsub.f32 1.0, %v492
    %v494 = vmul.f32 %v491, %v493
    %v495 = vadd.f32 %v491, %v494
    %vm496 = vweird.f32 %v490
    %vm497 = vweird.f32 %v491
    %vm498 = vmor %vm496, %vm497
    %v499 = vsel %vm498, %v491, %v495
    %v500 = vand.u32 2147483647, %v490
    %vm501 = vcmp.eq.f32.partialorder %v500, 8.507059e+37
    %v502 = vand.u32 %v490, 2147483648
    %v503 = vor.u32 1.1754944e-38, %v502
    %v504 = vsel %vm501, %v503, %v499
    %v505 = vmul.f32 1.0, %v504
    %v506 = vtanh.pop %v486
    %v507 = vmul.f32 %v505, %v371
    %509 = vrot.lane.b32.xlu0 %v506, 32
    %v510 = vpop.permute.xlu0 %509
    %v512 = vmul.f32 %v505, %v510
    %514 = vrot.lane.b32.xlu0 %v512, 32
    %v515 = vpop.permute.xlu0 %514
    %v517 = vadd.f32 %v507, %v515
    %v518 = vtanh.pop %v517
    %520 = vrot.lane.b32.xlu0 %v518, 32
    %v521 = vpop.permute.xlu0 %520
    %v523 = vmul.f32 %v505, %v521
    %v524 = vsel %vm453, 1, 0
    %525 = vset.pattern.permute.xlu0 0
    %526 = vperm.xlu0 %525, %v524
    %v527 = vpop.permute.xlu0 %526
    %vm528 = vcmp.eq.s32.totalorder %v527, 1
    %v529 = vsel %vm528, %v523, %v370
    %v530 = vsel %vm528, %v517, %v371
    %v531 = vpack.c.bf16 %v529, %v529
    %533 = vrot.lane.b32.xlu0 %v531, 64
    %v534 = vpop.permute.xlu0 %533
    %v536 = vsel %vm91, %v534, 0
    %538 = vmatpush.bf16.msra.mxu0 0
    %539 = vmatpush.bf16.msra.mxu0 0
    %540 = vmatpush.bf16.msra.mxu0 0
    %541 = vmatpush.bf16.msra.mxu0 0
    %542 = vmatpush.bf16.msra.mxu0 0
    %543 = vmatpush.bf16.msra.mxu0 0
    %544 = vmatpush.bf16.msra.mxu0 %v197
    %545 = vmatpush.bf16.msra.mxu0 %v196
    %546 = vmatmul.bf16.gmra.mxu0 %v536
    %v547 = vpop.f32.mrf.mxu0
    %v548 = vadd.f32 0.0, %v547
    %v549 = vpop.f32.mrf.mxu0
    %550 = vdwg.mxu0
    %552 = vrot.lane.b32.xlu0 %v456, 64
    %v553 = vpop.permute.xlu0 %552
    %v555 = vsel %vm91, %v553, 0
    %557 = vmatpush.bf16.msra.mxu0 0
    %558 = vmatpush.bf16.msra.mxu0 0
    %559 = vmatpush.bf16.msra.mxu0 0
    %560 = vmatpush.bf16.msra.mxu0 0
    %561 = vmatpush.bf16.msra.mxu0 0
    %562 = vmatpush.bf16.msra.mxu0 0
    %563 = vmatpush.bf16.msra.mxu0 %v225
    %564 = vmatpush.bf16.msra.mxu0 %v224
    %565 = vmatmul.bf16.gmra.mxu0 %v555
    %v566 = vpop.f32.mrf.mxu0
    %v567 = vadd.f32 %v548, %v566
    %v568 = vpop.f32.mrf.mxu0
    %569 = vdwg.mxu0
    %v570 = vadd.f32 %v567, %v66
    %v571 = vxor.u32 %v570, 2147483648
    %v572 = vmul.f32 %v571, 1.442695
    %v573 = vpow.pop %v572
    %v574 = vadd.f32 %v573, 1.0
    %v575 = vrcp.pop %v574
    %v576 = vmul.f32 %v574, %v575
    %v577 = vsub.f32 1.0, %v576
    %v578 = vmul.f32 %v575, %v577
    %v579 = vadd.f32 %v575, %v578
    %vm580 = vweird.f32 %v574
    %vm581 = vweird.f32 %v575
    %vm582 = vmor %vm580, %vm581
    %v583 = vsel %vm582, %v575, %v579
    %v584 = vand.u32 2147483647, %v574
    %vm585 = vcmp.eq.f32.partialorder %v584, 8.507059e+37
    %v586 = vand.u32 %v574, 2147483648
    %v587 = vor.u32 1.1754944e-38, %v586
    %v588 = vsel %vm585, %v587, %v583
    %v589 = vmul.f32 1.0, %v588
    %v590 = vtanh.pop %v570
    %v591 = vmul.f32 %v589, %v450
    %593 = vrot.lane.b32.xlu0 %v590, 32
    %v594 = vpop.permute.xlu0 %593
    %v596 = vmul.f32 %v589, %v594
    %598 = vrot.lane.b32.xlu0 %v596, 32
    %v599 = vpop.permute.xlu0 %598
    %v601 = vadd.f32 %v591, %v599
    %v602 = vtanh.pop %v601
    %604 = vrot.lane.b32.xlu0 %v602, 32
    %v605 = vpop.permute.xlu0 %604
    %v607 = vmul.f32 %v589, %v605
    %v608 = vsel %vm528, %v607, %v449
    %v609 = vsel %vm528, %v601, %v450
    %s610 = sadd.s32 %s69, 3
    %v611 = vstv %s610
    %vm612 = vcmp.lt.s32.totalorder %v611, %v68
    %s613 = scalar_lea.vmem %s1, 3
    %v614 = vld [vmem:[%s613] sm:$0x1]
    %v615 = vpack.c.bf16 %v608, %v608
    %616 = vmatpush.bf16.msra.mxu0 0
    %617 = vmatpush.bf16.msra.mxu0 0
    %618 = vmatpush.bf16.msra.mxu0 0
    %619 = vmatpush.bf16.msra.mxu0 0
    %620 = vmatpush.bf16.msra.mxu0 0
    %621 = vmatpush.bf16.msra.mxu0 0
    %622 = vmatpush.bf16.msra.mxu0 %v88
    %623 = vmatpush.bf16.msra.mxu0 %v87
    %624 = vmatmul.bf16.gmra.mxu0 %v536
    %v625 = vpop.f32.mrf.mxu0
    %v626 = vadd.f32 0.0, %v625
    %v627 = vpop.f32.mrf.mxu0
    %628 = vdwg.mxu0
    %v630 = vsel %vm114, %v614, 0
    %632 = vmatpush.bf16.msra.mxu0 0
    %633 = vmatpush.bf16.msra.mxu0 0
    %634 = vmatpush.bf16.msra.mxu0 0
    %635 = vmatpush.bf16.msra.mxu0 0
    %636 = vmatpush.bf16.msra.mxu0 0
    %637 = vmatpush.bf16.msra.mxu0 0
    %638 = vmatpush.bf16.msra.mxu0 0
    %639 = vmatpush.bf16.msra.mxu0 %v112
    %640 = vmatmul.bf16.gmra.mxu0 %v630
    %v641 = vpop.f32.mrf.mxu0
    %v642 = vadd.f32 %v626, %v641
    %v643 = vpop.f32.mrf.mxu0
    %644 = vdwg.mxu0
    %v645 = vadd.f32 %v642, %v62
    %v646 = vxor.u32 %v645, 2147483648
    %v647 = vmul.f32 %v646, 1.442695
    %v648 = vpow.pop %v647
    %v649 = vadd.f32 %v648, 1.0
    %v650 = vrcp.pop %v649
    %v651 = vmul.f32 %v649, %v650
    %v652 = vsub.f32 1.0, %v651
    %v653 = vmul.f32 %v650, %v652
    %v654 = vadd.f32 %v650, %v653
    %vm655 = vweird.f32 %v649
    %vm656 = vweird.f32 %v650
    %vm657 = vmor %vm655, %vm656
    %v658 = vsel %vm657, %v650, %v654
    %v659 = vand.u32 2147483647, %v649
    %vm660 = vcmp.eq.f32.partialorder %v659, 8.507059e+37
    %v661 = vand.u32 %v649, 2147483648
    %v662 = vor.u32 1.1754944e-38, %v661
    %v663 = vsel %vm660, %v662, %v658
    %v664 = vmul.f32 1.0, %v663
    %v665 = vtanh.pop %v645
    %v666 = vmul.f32 %v664, %v530
    %668 = vrot.lane.b32.xlu0 %v665, 32
    %v669 = vpop.permute.xlu0 %668
    %v671 = vmul.f32 %v664, %v669
    %673 = vrot.lane.b32.xlu0 %v671, 32
    %v674 = vpop.permute.xlu0 %673
    %v676 = vadd.f32 %v666, %v674
    %v677 = vtanh.pop %v676
    %679 = vrot.lane.b32.xlu0 %v677, 32
    %v680 = vpop.permute.xlu0 %679
    %v682 = vmul.f32 %v664, %v680
    %v683 = vsel %vm612, 1, 0
    %684 = vset.pattern.permute.xlu0 0
    %685 = vperm.xlu0 %684, %v683
    %v686 = vpop.permute.xlu0 %685
    %vm687 = vcmp.eq.s32.totalorder %v686, 1
    %v688 = vsel %vm687, %v682, %v529
    %v689 = vsel %vm687, %v676, %v530
    %v690 = vpack.c.bf16 %v688, %v688
    %692 = vrot.lane.b32.xlu0 %v690, 64
    %v693 = vpop.permute.xlu0 %692
    %v695 = vsel %vm91, %v693, 0
    %697 = vmatpush.bf16.msra.mxu0 0
    %698 = vmatpush.bf16.msra.mxu0 0
    %699 = vmatpush.bf16.msra.mxu0 0
    %700 = vmatpush.bf16.msra.mxu0 0
    %701 = vmatpush.bf16.msra.mxu0 0
    %702 = vmatpush.bf16.msra.mxu0 0
    %703 = vmatpush.bf16.msra.mxu0 %v197
    %704 = vmatpush.bf16.msra.mxu0 %v196
    %705 = vmatmul.bf16.gmra.mxu0 %v695
    %v706 = vpop.f32.mrf.mxu0
    %v707 = vadd.f32 0.0, %v706
    %v708 = vpop.f32.mrf.mxu0
    %709 = vdwg.mxu0
    %711 = vrot.lane.b32.xlu0 %v615, 64
    %v712 = vpop.permute.xlu0 %711
    %v714 = vsel %vm91, %v712, 0
    %716 = vmatpush.bf16.msra.mxu0 0
    %717 = vmatpush.bf16.msra.mxu0 0
    %718 = vmatpush.bf16.msra.mxu0 0
    %719 = vmatpush.bf16.msra.mxu0 0
    %720 = vmatpush.bf16.msra.mxu0 0
    %721 = vmatpush.bf16.msra.mxu0 0
    %722 = vmatpush.bf16.msra.mxu0 %v225
    %723 = vmatpush.bf16.msra.mxu0 %v224
    %724 = vmatmul.bf16.gmra.mxu0 %v714
    %v725 = vpop.f32.mrf.mxu0
    %v726 = vadd.f32 %v707, %v725
    %v727 = vpop.f32.mrf.mxu0
    %728 = vdwg.mxu0
    %v729 = vadd.f32 %v726, %v66
    %v730 = vxor.u32 %v729, 2147483648
    %v731 = vmul.f32 %v730, 1.442695
    %v732 = vpow.pop %v731
    %v733 = vadd.f32 %v732, 1.0
    %v734 = vrcp.pop %v733
    %v735 = vmul.f32 %v733, %v734
    %v736 = vsub.f32 1.0, %v735
    %v737 = vmul.f32 %v734, %v736
    %v738 = vadd.f32 %v734, %v737
    %vm739 = vweird.f32 %v733
    %vm740 = vweird.f32 %v734
    %vm741 = vmor %vm739, %vm740
    %v742 = vsel %vm741, %v734, %v738
    %v743 = vand.u32 2147483647, %v733
    %vm744 = vcmp.eq.f32.partialorder %v743, 8.507059e+37
    %v745 = vand.u32 %v733, 2147483648
    %v746 = vor.u32 1.1754944e-38, %v745
    %v747 = vsel %vm744, %v746, %v742
    %v748 = vmul.f32 1.0, %v747
    %v749 = vtanh.pop %v729
    %v750 = vmul.f32 %v748, %v609
    %752 = vrot.lane.b32.xlu0 %v749, 32
    %v753 = vpop.permute.xlu0 %752
    %v755 = vmul.f32 %v748, %v753
    %757 = vrot.lane.b32.xlu0 %v755, 32
    %v758 = vpop.permute.xlu0 %757
    %v760 = vadd.f32 %v750, %v758
    %v761 = vtanh.pop %v760
    %763 = vrot.lane.b32.xlu0 %v761, 32
    %v764 = vpop.permute.xlu0 %763
    %v766 = vmul.f32 %v748, %v764
    %v767 = vsel %vm687, %v766, %v608
    %v768 = vsel %vm687, %v760, %v609
    %s769 = sadd.s32 %s69, 4
    %v770 = vstv %s769
    %vm771 = vcmp.lt.s32.totalorder %v770, %v68
    %s772 = scalar_lea.vmem %s1, 4
    %v773 = vld [vmem:[%s772] sm:$0x1]
    %v774 = vpack.c.bf16 %v767, %v767
    %775 = vmatpush.bf16.msra.mxu0 0
    %776 = vmatpush.bf16.msra.mxu0 0
    %777 = vmatpush.bf16.msra.mxu0 0
    %778 = vmatpush.bf16.msra.mxu0 0
    %779 = vmatpush.bf16.msra.mxu0 0
    %780 = vmatpush.bf16.msra.mxu0 0
    %781 = vmatpush.bf16.msra.mxu0 %v88
    %782 = vmatpush.bf16.msra.mxu0 %v87
    %783 = vmatmul.bf16.gmra.mxu0 %v695
    %v784 = vpop.f32.mrf.mxu0
    %v785 = vadd.f32 0.0, %v784
    %v786 = vpop.f32.mrf.mxu0
    %787 = vdwg.mxu0
    %v789 = vsel %vm114, %v773, 0
    %791 = vmatpush.bf16.msra.mxu0 0
    %792 = vmatpush.bf16.msra.mxu0 0
    %793 = vmatpush.bf16.msra.mxu0 0
    %794 = vmatpush.bf16.msra.mxu0 0
    %795 = vmatpush.bf16.msra.mxu0 0
    %796 = vmatpush.bf16.msra.mxu0 0
    %797 = vmatpush.bf16.msra.mxu0 0
    %798 = vmatpush.bf16.msra.mxu0 %v112
    %799 = vmatmul.bf16.gmra.mxu0 %v789
    %v800 = vpop.f32.mrf.mxu0
    %v801 = vadd.f32 %v785, %v800
    %v802 = vpop.f32.mrf.mxu0
    %803 = vdwg.mxu0
    %v804 = vadd.f32 %v801, %v62
    %v805 = vxor.u32 %v804, 2147483648
    %v806 = vmul.f32 %v805, 1.442695
    %v807 = vpow.pop %v806
    %v808 = vadd.f32 %v807, 1.0
    %v809 = vrcp.pop %v808
    %v810 = vmul.f32 %v808, %v809
    %v811 = vsub.f32 1.0, %v810
    %v812 = vmul.f32 %v809, %v811
    %v813 = vadd.f32 %v809, %v812
    %vm814 = vweird.f32 %v808
    %vm815 = vweird.f32 %v809
    %vm816 = vmor %vm814, %vm815
    %v817 = vsel %vm816, %v809, %v813
    %v818 = vand.u32 2147483647, %v808
    %vm819 = vcmp.eq.f32.partialorder %v818, 8.507059e+37
    %v820 = vand.u32 %v808, 2147483648
    %v821 = vor.u32 1.1754944e-38, %v820
    %v822 = vsel %vm819, %v821, %v817
    %v823 = vmul.f32 1.0, %v822
    %v824 = vtanh.pop %v804
    %v825 = vmul.f32 %v823, %v689
    %827 = vrot.lane.b32.xlu0 %v824, 32
    %v828 = vpop.permute.xlu0 %827
    %v830 = vmul.f32 %v823, %v828
    %832 = vrot.lane.b32.xlu0 %v830, 32
    %v833 = vpop.permute.xlu0 %832
    %v835 = vadd.f32 %v825, %v833
    %v836 = vtanh.pop %v835
    %838 = vrot.lane.b32.xlu0 %v836, 32
    %v839 = vpop.permute.xlu0 %838
    %v841 = vmul.f32 %v823, %v839
    %v842 = vsel %vm771, 1, 0
    %843 = vset.pattern.permute.xlu0 0
    %844 = vperm.xlu0 %843, %v842
    %v845 = vpop.permute.xlu0 %844
    %vm846 = vcmp.eq.s32.totalorder %v845, 1
    %v847 = vsel %vm846, %v841, %v688
    %v848 = vsel %vm846, %v835, %v689
    %v849 = vpack.c.bf16 %v847, %v847
    %851 = vrot.lane.b32.xlu0 %v849, 64
    %v852 = vpop.permute.xlu0 %851
    %v854 = vsel %vm91, %v852, 0
    %856 = vmatpush.bf16.msra.mxu0 0
    %857 = vmatpush.bf16.msra.mxu0 0
    %858 = vmatpush.bf16.msra.mxu0 0
    %859 = vmatpush.bf16.msra.mxu0 0
    %860 = vmatpush.bf16.msra.mxu0 0
    %861 = vmatpush.bf16.msra.mxu0 0
    %862 = vmatpush.bf16.msra.mxu0 %v197
    %863 = vmatpush.bf16.msra.mxu0 %v196
    %864 = vmatmul.bf16.gmra.mxu0 %v854
    %v865 = vpop.f32.mrf.mxu0
    %v866 = vadd.f32 0.0, %v865
    %v867 = vpop.f32.mrf.mxu0
    %868 = vdwg.mxu0
    %870 = vrot.lane.b32.xlu0 %v774, 64
    %v871 = vpop.permute.xlu0 %870
    %v873 = vsel %vm91, %v871, 0
    %875 = vmatpush.bf16.msra.mxu0 0
    %876 = vmatpush.bf16.msra.mxu0 0
    %877 = vmatpush.bf16.msra.mxu0 0
    %878 = vmatpush.bf16.msra.mxu0 0
    %879 = vmatpush.bf16.msra.mxu0 0
    %880 = vmatpush.bf16.msra.mxu0 0
    %881 = vmatpush.bf16.msra.mxu0 %v225
    %882 = vmatpush.bf16.msra.mxu0 %v224
    %883 = vmatmul.bf16.gmra.mxu0 %v873
    %v884 = vpop.f32.mrf.mxu0
    %v885 = vadd.f32 %v866, %v884
    %v886 = vpop.f32.mrf.mxu0
    %887 = vdwg.mxu0
    %v888 = vadd.f32 %v885, %v66
    %v889 = vxor.u32 %v888, 2147483648
    %v890 = vmul.f32 %v889, 1.442695
    %v891 = vpow.pop %v890
    %v892 = vadd.f32 %v891, 1.0
    %v893 = vrcp.pop %v892
    %v894 = vmul.f32 %v892, %v893
    %v895 = vsub.f32 1.0, %v894
    %v896 = vmul.f32 %v893, %v895
    %v897 = vadd.f32 %v893, %v896
    %vm898 = vweird.f32 %v892
    %vm899 = vweird.f32 %v893
    %vm900 = vmor %vm898, %vm899
    %v901 = vsel %vm900, %v893, %v897
    %v902 = vand.u32 2147483647, %v892
    %vm903 = vcmp.eq.f32.partialorder %v902, 8.507059e+37
    %v904 = vand.u32 %v892, 2147483648
    %v905 = vor.u32 1.1754944e-38, %v904
    %v906 = vsel %vm903, %v905, %v901
    %v907 = vmul.f32 1.0, %v906
    %v908 = vtanh.pop %v888
    %v909 = vmul.f32 %v907, %v768
    %911 = vrot.lane.b32.xlu0 %v908, 32
    %v912 = vpop.permute.xlu0 %911
    %v914 = vmul.f32 %v907, %v912
    %916 = vrot.lane.b32.xlu0 %v914, 32
    %v917 = vpop.permute.xlu0 %916
    %v919 = vadd.f32 %v909, %v917
    %v920 = vtanh.pop %v919
    %922 = vrot.lane.b32.xlu0 %v920, 32
    %v923 = vpop.permute.xlu0 %922
    %v925 = vmul.f32 %v907, %v923
    %v926 = vsel %vm846, %v925, %v767
    %v927 = vsel %vm846, %v919, %v768
    %s928 = sadd.s32 %s69, 5
    %v929 = vstv %s928
    %vm930 = vcmp.lt.s32.totalorder %v929, %v68
    %s931 = scalar_lea.vmem %s1, 5
    %v932 = vld [vmem:[%s931] sm:$0x1]
    %v933 = vpack.c.bf16 %v926, %v926
    %934 = vmatpush.bf16.msra.mxu0 0
    %935 = vmatpush.bf16.msra.mxu0 0
    %936 = vmatpush.bf16.msra.mxu0 0
    %937 = vmatpush.bf16.msra.mxu0 0
    %938 = vmatpush.bf16.msra.mxu0 0
    %939 = vmatpush.bf16.msra.mxu0 0
    %940 = vmatpush.bf16.msra.mxu0 %v88
    %941 = vmatpush.bf16.msra.mxu0 %v87
    %942 = vmatmul.bf16.gmra.mxu0 %v854
    %v943 = vpop.f32.mrf.mxu0
    %v944 = vadd.f32 0.0, %v943
    %v945 = vpop.f32.mrf.mxu0
    %946 = vdwg.mxu0
    %v948 = vsel %vm114, %v932, 0
    %950 = vmatpush.bf16.msra.mxu0 0
    %951 = vmatpush.bf16.msra.mxu0 0
    %952 = vmatpush.bf16.msra.mxu0 0
    %953 = vmatpush.bf16.msra.mxu0 0
    %954 = vmatpush.bf16.msra.mxu0 0
    %955 = vmatpush.bf16.msra.mxu0 0
    %956 = vmatpush.bf16.msra.mxu0 0
    %957 = vmatpush.bf16.msra.mxu0 %v112
    %958 = vmatmul.bf16.gmra.mxu0 %v948
    %v959 = vpop.f32.mrf.mxu0
    %v960 = vadd.f32 %v944, %v959
    %v961 = vpop.f32.mrf.mxu0
    %962 = vdwg.mxu0
    %v963 = vadd.f32 %v960, %v62
    %v964 = vxor.u32 %v963, 2147483648
    %v965 = vmul.f32 %v964, 1.442695
    %v966 = vpow.pop %v965
    %v967 = vadd.f32 %v966, 1.0
    %v968 = vrcp.pop %v967
    %v969 = vmul.f32 %v967, %v968
    %v970 = vsub.f32 1.0, %v969
    %v971 = vmul.f32 %v968, %v970
    %v972 = vadd.f32 %v968, %v971
    %vm973 = vweird.f32 %v967
    %vm974 = vweird.f32 %v968
    %vm975 = vmor %vm973, %vm974
    %v976 = vsel %vm975, %v968, %v972
    %v977 = vand.u32 2147483647, %v967
    %vm978 = vcmp.eq.f32.partialorder %v977, 8.507059e+37
    %v979 = vand.u32 %v967, 2147483648
    %v980 = vor.u32 1.1754944e-38, %v979
    %v981 = vsel %vm978, %v980, %v976
    %v982 = vmul.f32 1.0, %v981
    %v983 = vtanh.pop %v963
    %v984 = vmul.f32 %v982, %v848
    %986 = vrot.lane.b32.xlu0 %v983, 32
    %v987 = vpop.permute.xlu0 %986
    %v989 = vmul.f32 %v982, %v987
    %991 = vrot.lane.b32.xlu0 %v989, 32
    %v992 = vpop.permute.xlu0 %991
    %v994 = vadd.f32 %v984, %v992
    %v995 = vtanh.pop %v994
    %997 = vrot.lane.b32.xlu0 %v995, 32
    %v998 = vpop.permute.xlu0 %997
    %v1000 = vmul.f32 %v982, %v998
    %v1001 = vsel %vm930, 1, 0
    %1002 = vset.pattern.permute.xlu0 0
    %1003 = vperm.xlu0 %1002, %v1001
    %v1004 = vpop.permute.xlu0 %1003
    %vm1005 = vcmp.eq.s32.totalorder %v1004, 1
    %v1006 = vsel %vm1005, %v1000, %v847
    %v1007 = vsel %vm1005, %v994, %v848
    %v1008 = vpack.c.bf16 %v1006, %v1006
    %1010 = vrot.lane.b32.xlu0 %v1008, 64
    %v1011 = vpop.permute.xlu0 %1010
    %v1013 = vsel %vm91, %v1011, 0
    %1015 = vmatpush.bf16.msra.mxu0 0
    %1016 = vmatpush.bf16.msra.mxu0 0
    %1017 = vmatpush.bf16.msra.mxu0 0
    %1018 = vmatpush.bf16.msra.mxu0 0
    %1019 = vmatpush.bf16.msra.mxu0 0
    %1020 = vmatpush.bf16.msra.mxu0 0
    %1021 = vmatpush.bf16.msra.mxu0 %v197
    %1022 = vmatpush.bf16.msra.mxu0 %v196
    %1023 = vmatmul.bf16.gmra.mxu0 %v1013
    %v1024 = vpop.f32.mrf.mxu0
    %v1025 = vadd.f32 0.0, %v1024
    %v1026 = vpop.f32.mrf.mxu0
    %1027 = vdwg.mxu0
    %1029 = vrot.lane.b32.xlu0 %v933, 64
    %v1030 = vpop.permute.xlu0 %1029
    %v1032 = vsel %vm91, %v1030, 0
    %1034 = vmatpush.bf16.msra.mxu0 0
    %1035 = vmatpush.bf16.msra.mxu0 0
    %1036 = vmatpush.bf16.msra.mxu0 0
    %1037 = vmatpush.bf16.msra.mxu0 0
    %1038 = vmatpush.bf16.msra.mxu0 0
    %1039 = vmatpush.bf16.msra.mxu0 0
    %1040 = vmatpush.bf16.msra.mxu0 %v225
    %1041 = vmatpush.bf16.msra.mxu0 %v224
    %1042 = vmatmul.bf16.gmra.mxu0 %v1032
    %v1043 = vpop.f32.mrf.mxu0
    %v1044 = vadd.f32 %v1025, %v1043
    %v1045 = vpop.f32.mrf.mxu0
    %1046 = vdwg.mxu0
    %v1047 = vadd.f32 %v1044, %v66
    %v1048 = vxor.u32 %v1047, 2147483648
    %v1049 = vmul.f32 %v1048, 1.442695
    %v1050 = vpow.pop %v1049
    %v1051 = vadd.f32 %v1050, 1.0
    %v1052 = vrcp.pop %v1051
    %v1053 = vmul.f32 %v1051, %v1052
    %v1054 = vsub.f32 1.0, %v1053
    %v1055 = vmul.f32 %v1052, %v1054
    %v1056 = vadd.f32 %v1052, %v1055
    %vm1057 = vweird.f32 %v1051
    %vm1058 = vweird.f32 %v1052
    %vm1059 = vmor %vm1057, %vm1058
    %v1060 = vsel %vm1059, %v1052, %v1056
    %v1061 = vand.u32 2147483647, %v1051
    %vm1062 = vcmp.eq.f32.partialorder %v1061, 8.507059e+37
    %v1063 = vand.u32 %v1051, 2147483648
    %v1064 = vor.u32 1.1754944e-38, %v1063
    %v1065 = vsel %vm1062, %v1064, %v1060
    %v1066 = vmul.f32 1.0, %v1065
    %v1067 = vtanh.pop %v1047
    %v1068 = vmul.f32 %v1066, %v927
    %1070 = vrot.lane.b32.xlu0 %v1067, 32
    %v1071 = vpop.permute.xlu0 %1070
    %v1073 = vmul.f32 %v1066, %v1071
    %1075 = vrot.lane.b32.xlu0 %v1073, 32
    %v1076 = vpop.permute.xlu0 %1075
    %v1078 = vadd.f32 %v1068, %v1076
    %v1079 = vtanh.pop %v1078
    %1081 = vrot.lane.b32.xlu0 %v1079, 32
    %v1082 = vpop.permute.xlu0 %1081
    %v1084 = vmul.f32 %v1066, %v1082
    %v1085 = vsel %vm1005, %v1084, %v926
    %v1086 = vsel %vm1005, %v1078, %v927
    %s1087 = sadd.s32 %s69, 6
    %v1088 = vstv %s1087
    %vm1089 = vcmp.lt.s32.totalorder %v1088, %v68
    %s1090 = scalar_lea.vmem %s1, 6
    %v1091 = vld [vmem:[%s1090] sm:$0x1]
    %v1092 = vpack.c.bf16 %v1085, %v1085
    %1093 = vmatpush.bf16.msra.mxu0 0
    %1094 = vmatpush.bf16.msra.mxu0 0
    %1095 = vmatpush.bf16.msra.mxu0 0
    %1096 = vmatpush.bf16.msra.mxu0 0
    %1097 = vmatpush.bf16.msra.mxu0 0
    %1098 = vmatpush.bf16.msra.mxu0 0
    %1099 = vmatpush.bf16.msra.mxu0 %v88
    %1100 = vmatpush.bf16.msra.mxu0 %v87
    %1101 = vmatmul.bf16.gmra.mxu0 %v1013
    %v1102 = vpop.f32.mrf.mxu0
    %v1103 = vadd.f32 0.0, %v1102
    %v1104 = vpop.f32.mrf.mxu0
    %1105 = vdwg.mxu0
    %v1107 = vsel %vm114, %v1091, 0
    %1109 = vmatpush.bf16.msra.mxu0 0
    %1110 = vmatpush.bf16.msra.mxu0 0
    %1111 = vmatpush.bf16.msra.mxu0 0
    %1112 = vmatpush.bf16.msra.mxu0 0
    %1113 = vmatpush.bf16.msra.mxu0 0
    %1114 = vmatpush.bf16.msra.mxu0 0
    %1115 = vmatpush.bf16.msra.mxu0 0
    %1116 = vmatpush.bf16.msra.mxu0 %v112
    %1117 = vmatmul.bf16.gmra.mxu0 %v1107
    %v1118 = vpop.f32.mrf.mxu0
    %v1119 = vadd.f32 %v1103, %v1118
    %v1120 = vpop.f32.mrf.mxu0
    %1121 = vdwg.mxu0
    %v1122 = vadd.f32 %v1119, %v62
    %v1123 = vxor.u32 %v1122, 2147483648
    %v1124 = vmul.f32 %v1123, 1.442695
    %v1125 = vpow.pop %v1124
    %v1126 = vadd.f32 %v1125, 1.0
    %v1127 = vrcp.pop %v1126
    %v1128 = vmul.f32 %v1126, %v1127
    %v1129 = vsub.f32 1.0, %v1128
    %v1130 = vmul.f32 %v1127, %v1129
    %v1131 = vadd.f32 %v1127, %v1130
    %vm1132 = vweird.f32 %v1126
    %vm1133 = vweird.f32 %v1127
    %vm1134 = vmor %vm1132, %vm1133
    %v1135 = vsel %vm1134, %v1127, %v1131
    %v1136 = vand.u32 2147483647, %v1126
    %vm1137 = vcmp.eq.f32.partialorder %v1136, 8.507059e+37
    %v1138 = vand.u32 %v1126, 2147483648
    %v1139 = vor.u32 1.1754944e-38, %v1138
    %v1140 = vsel %vm1137, %v1139, %v1135
    %v1141 = vmul.f32 1.0, %v1140
    %v1142 = vtanh.pop %v1122
    %v1143 = vmul.f32 %v1141, %v1007
    %1145 = vrot.lane.b32.xlu0 %v1142, 32
    %v1146 = vpop.permute.xlu0 %1145
    %v1148 = vmul.f32 %v1141, %v1146
    %1150 = vrot.lane.b32.xlu0 %v1148, 32
    %v1151 = vpop.permute.xlu0 %1150
    %v1153 = vadd.f32 %v1143, %v1151
    %v1154 = vtanh.pop %v1153
    %1156 = vrot.lane.b32.xlu0 %v1154, 32
    %v1157 = vpop.permute.xlu0 %1156
    %v1159 = vmul.f32 %v1141, %v1157
    %v1160 = vsel %vm1089, 1, 0
    %1161 = vset.pattern.permute.xlu0 0
    %1162 = vperm.xlu0 %1161, %v1160
    %v1163 = vpop.permute.xlu0 %1162
    %vm1164 = vcmp.eq.s32.totalorder %v1163, 1
    %v1165 = vsel %vm1164, %v1159, %v1006
    %v1166 = vsel %vm1164, %v1153, %v1007
    %v1167 = vpack.c.bf16 %v1165, %v1165
    %1169 = vrot.lane.b32.xlu0 %v1167, 64
    %v1170 = vpop.permute.xlu0 %1169
    %v1172 = vsel %vm91, %v1170, 0
    %1174 = vmatpush.bf16.msra.mxu0 0
    %1175 = vmatpush.bf16.msra.mxu0 0
    %1176 = vmatpush.bf16.msra.mxu0 0
    %1177 = vmatpush.bf16.msra.mxu0 0
    %1178 = vmatpush.bf16.msra.mxu0 0
    %1179 = vmatpush.bf16.msra.mxu0 0
    %1180 = vmatpush.bf16.msra.mxu0 %v197
    %1181 = vmatpush.bf16.msra.mxu0 %v196
    %1182 = vmatmul.bf16.gmra.mxu0 %v1172
    %v1183 = vpop.f32.mrf.mxu0
    %v1184 = vadd.f32 0.0, %v1183
    %v1185 = vpop.f32.mrf.mxu0
    %1186 = vdwg.mxu0
    %1188 = vrot.lane.b32.xlu0 %v1092, 64
    %v1189 = vpop.permute.xlu0 %1188
    %v1191 = vsel %vm91, %v1189, 0
    %1193 = vmatpush.bf16.msra.mxu0 0
    %1194 = vmatpush.bf16.msra.mxu0 0
    %1195 = vmatpush.bf16.msra.mxu0 0
    %1196 = vmatpush.bf16.msra.mxu0 0
    %1197 = vmatpush.bf16.msra.mxu0 0
    %1198 = vmatpush.bf16.msra.mxu0 0
    %1199 = vmatpush.bf16.msra.mxu0 %v225
    %1200 = vmatpush.bf16.msra.mxu0 %v224
    %1201 = vmatmul.bf16.gmra.mxu0 %v1191
    %v1202 = vpop.f32.mrf.mxu0
    %v1203 = vadd.f32 %v1184, %v1202
    %v1204 = vpop.f32.mrf.mxu0
    %1205 = vdwg.mxu0
    %v1206 = vadd.f32 %v1203, %v66
    %v1207 = vxor.u32 %v1206, 2147483648
    %v1208 = vmul.f32 %v1207, 1.442695
    %v1209 = vpow.pop %v1208
    %v1210 = vadd.f32 %v1209, 1.0
    %v1211 = vrcp.pop %v1210
    %v1212 = vmul.f32 %v1210, %v1211
    %v1213 = vsub.f32 1.0, %v1212
    %v1214 = vmul.f32 %v1211, %v1213
    %v1215 = vadd.f32 %v1211, %v1214
    %vm1216 = vweird.f32 %v1210
    %vm1217 = vweird.f32 %v1211
    %vm1218 = vmor %vm1216, %vm1217
    %v1219 = vsel %vm1218, %v1211, %v1215
    %v1220 = vand.u32 2147483647, %v1210
    %vm1221 = vcmp.eq.f32.partialorder %v1220, 8.507059e+37
    %v1222 = vand.u32 %v1210, 2147483648
    %v1223 = vor.u32 1.1754944e-38, %v1222
    %v1224 = vsel %vm1221, %v1223, %v1219
    %v1225 = vmul.f32 1.0, %v1224
    %v1226 = vtanh.pop %v1206
    %v1227 = vmul.f32 %v1225, %v1086
    %1229 = vrot.lane.b32.xlu0 %v1226, 32
    %v1230 = vpop.permute.xlu0 %1229
    %v1232 = vmul.f32 %v1225, %v1230
    %1234 = vrot.lane.b32.xlu0 %v1232, 32
    %v1235 = vpop.permute.xlu0 %1234
    %v1237 = vadd.f32 %v1227, %v1235
    %v1238 = vtanh.pop %v1237
    %1240 = vrot.lane.b32.xlu0 %v1238, 32
    %v1241 = vpop.permute.xlu0 %1240
    %v1243 = vmul.f32 %v1225, %v1241
    %v1244 = vsel %vm1164, %v1243, %v1085
    %v1245 = vsel %vm1164, %v1237, %v1086
    %s1246 = sadd.s32 %s69, 7
    %v1247 = vstv %s1246
    %vm1248 = vcmp.lt.s32.totalorder %v1247, %v68
    %s1249 = scalar_lea.vmem %s1, 7
    %v1250 = vld [vmem:[%s1249] sm:$0x1]
    %v1251 = vpack.c.bf16 %v1244, %v1244
    %1252 = vmatpush.bf16.msra.mxu0 0
    %1253 = vmatpush.bf16.msra.mxu0 0
    %1254 = vmatpush.bf16.msra.mxu0 0
    %1255 = vmatpush.bf16.msra.mxu0 0
    %1256 = vmatpush.bf16.msra.mxu0 0
    %1257 = vmatpush.bf16.msra.mxu0 0
    %1258 = vmatpush.bf16.msra.mxu0 %v88
    %1259 = vmatpush.bf16.msra.mxu0 %v87
    %1260 = vmatmul.bf16.gmra.mxu0 %v1172
    %v1261 = vpop.f32.mrf.mxu0
    %v1262 = vadd.f32 0.0, %v1261
    %v1263 = vpop.f32.mrf.mxu0
    %1264 = vdwg.mxu0
    %v1266 = vsel %vm114, %v1250, 0
    %1268 = vmatpush.bf16.msra.mxu0 0
    %1269 = vmatpush.bf16.msra.mxu0 0
    %1270 = vmatpush.bf16.msra.mxu0 0
    %1271 = vmatpush.bf16.msra.mxu0 0
    %1272 = vmatpush.bf16.msra.mxu0 0
    %1273 = vmatpush.bf16.msra.mxu0 0
    %1274 = vmatpush.bf16.msra.mxu0 0
    %1275 = vmatpush.bf16.msra.mxu0 %v112
    %1276 = vmatmul.bf16.gmra.mxu0 %v1266
    %v1277 = vpop.f32.mrf.mxu0
    %v1278 = vadd.f32 %v1262, %v1277
    %v1279 = vpop.f32.mrf.mxu0
    %1280 = vdwg.mxu0
    %v1281 = vadd.f32 %v1278, %v62
    %v1282 = vxor.u32 %v1281, 2147483648
    %v1283 = vmul.f32 %v1282, 1.442695
    %v1284 = vpow.pop %v1283
    %v1285 = vadd.f32 %v1284, 1.0
    %v1286 = vrcp.pop %v1285
    %v1287 = vmul.f32 %v1285, %v1286
    %v1288 = vsub.f32 1.0, %v1287
    %v1289 = vmul.f32 %v1286, %v1288
    %v1290 = vadd.f32 %v1286, %v1289
    %vm1291 = vweird.f32 %v1285
    %vm1292 = vweird.f32 %v1286
    %vm1293 = vmor %vm1291, %vm1292
    %v1294 = vsel %vm1293, %v1286, %v1290
    %v1295 = vand.u32 2147483647, %v1285
    %vm1296 = vcmp.eq.f32.partialorder %v1295, 8.507059e+37
    %v1297 = vand.u32 %v1285, 2147483648
    %v1298 = vor.u32 1.1754944e-38, %v1297
    %v1299 = vsel %vm1296, %v1298, %v1294
    %v1300 = vmul.f32 1.0, %v1299
    %v1301 = vtanh.pop %v1281
    %v1302 = vmul.f32 %v1300, %v1166
    %1304 = vrot.lane.b32.xlu0 %v1301, 32
    %v1305 = vpop.permute.xlu0 %1304
    %v1307 = vmul.f32 %v1300, %v1305
    %1309 = vrot.lane.b32.xlu0 %v1307, 32
    %v1310 = vpop.permute.xlu0 %1309
    %v1312 = vadd.f32 %v1302, %v1310
    %v1313 = vtanh.pop %v1312
    %1315 = vrot.lane.b32.xlu0 %v1313, 32
    %v1316 = vpop.permute.xlu0 %1315
    %v1318 = vmul.f32 %v1300, %v1316
    %v1319 = vsel %vm1248, 1, 0
    %1320 = vset.pattern.permute.xlu0 0
    %1321 = vperm.xlu0 %1320, %v1319
    %v1322 = vpop.permute.xlu0 %1321
    %vm1323 = vcmp.eq.s32.totalorder %v1322, 1
    %v1324 = vsel %vm1323, %v1318, %v1165
    %v1325 = vsel %vm1323, %v1312, %v1166
    %v1326 = vpack.c.bf16 %v1324, %v1324
    %1328 = vrot.lane.b32.xlu0 %v1326, 64
    %v1329 = vpop.permute.xlu0 %1328
    %v1331 = vsel %vm91, %v1329, 0
    %1333 = vmatpush.bf16.msra.mxu0 0
    %1334 = vmatpush.bf16.msra.mxu0 0
    %1335 = vmatpush.bf16.msra.mxu0 0
    %1336 = vmatpush.bf16.msra.mxu0 0
    %1337 = vmatpush.bf16.msra.mxu0 0
    %1338 = vmatpush.bf16.msra.mxu0 0
    %1339 = vmatpush.bf16.msra.mxu0 %v197
    %1340 = vmatpush.bf16.msra.mxu0 %v196
    %1341 = vmatmul.bf16.gmra.mxu0 %v1331
    %v1342 = vpop.f32.mrf.mxu0
    %v1343 = vadd.f32 0.0, %v1342
    %v1344 = vpop.f32.mrf.mxu0
    %1345 = vdwg.mxu0
    %1347 = vrot.lane.b32.xlu0 %v1251, 64
    %v1348 = vpop.permute.xlu0 %1347
    %v1350 = vsel %vm91, %v1348, 0
    %1352 = vmatpush.bf16.msra.mxu0 0
    %1353 = vmatpush.bf16.msra.mxu0 0
    %1354 = vmatpush.bf16.msra.mxu0 0
    %1355 = vmatpush.bf16.msra.mxu0 0
    %1356 = vmatpush.bf16.msra.mxu0 0
    %1357 = vmatpush.bf16.msra.mxu0 0
    %1358 = vmatpush.bf16.msra.mxu0 %v225
    %1359 = vmatpush.bf16.msra.mxu0 %v224
    %1360 = vmatmul.bf16.gmra.mxu0 %v1350
    %v1361 = vpop.f32.mrf.mxu0
    %v1362 = vadd.f32 %v1343, %v1361
    %v1363 = vpop.f32.mrf.mxu0
    %1364 = vdwg.mxu0
    %v1365 = vadd.f32 %v1362, %v66
    %v1366 = vxor.u32 %v1365, 2147483648
    %v1367 = vmul.f32 %v1366, 1.442695
    %v1368 = vpow.pop %v1367
    %v1369 = vadd.f32 %v1368, 1.0
    %v1370 = vrcp.pop %v1369
    %v1371 = vmul.f32 %v1369, %v1370
    %v1372 = vsub.f32 1.0, %v1371
    %v1373 = vmul.f32 %v1370, %v1372
    %v1374 = vadd.f32 %v1370, %v1373
    %vm1375 = vweird.f32 %v1369
    %vm1376 = vweird.f32 %v1370
    %vm1377 = vmor %vm1375, %vm1376
    %v1378 = vsel %vm1377, %v1370, %v1374
    %v1379 = vand.u32 2147483647, %v1369
    %vm1380 = vcmp.eq.f32.partialorder %v1379, 8.507059e+37
    %v1381 = vand.u32 %v1369, 2147483648
    %v1382 = vor.u32 1.1754944e-38, %v1381
    %v1383 = vsel %vm1380, %v1382, %v1378
    %v1384 = vmul.f32 1.0, %v1383
    %v1385 = vtanh.pop %v1365
    %v1386 = vmul.f32 %v1384, %v1245
    %1388 = vrot.lane.b32.xlu0 %v1385, 32
    %v1389 = vpop.permute.xlu0 %1388
    %v1391 = vmul.f32 %v1384, %v1389
    %1393 = vrot.lane.b32.xlu0 %v1391, 32
    %v1394 = vpop.permute.xlu0 %1393
    %v1396 = vadd.f32 %v1386, %v1394
    %v1397 = vtanh.pop %v1396
    %1399 = vrot.lane.b32.xlu0 %v1397, 32
    %v1400 = vpop.permute.xlu0 %1399
    %v1402 = vmul.f32 %v1384, %v1400
    %v1403 = vsel %vm1323, %v1402, %v1244
    %v1404 = vsel %vm1323, %v1396, %v1245
    %1406 = vrot.lane.b32.xlu0 %v1324, 64
    %v1407 = vpop.permute.xlu0 %1406
    %vm1409 = vcmask 254976
    %1410 = vst.msk [vmem:[#allocation2] sm:$0x3] %vm1409, %v1407
    %1412 = vrot.lane.b32.xlu0 %v1325, 96
    %v1413 = vpop.permute.xlu0 %1412
    %1415 = vst.msk [vmem:[#allocation3] sm:$0x3] %vm1409, %v1413
    %1417 = vrot.lane.b32.xlu0 %v1403, 64
    %v1418 = vpop.permute.xlu0 %1417
    %1420 = vst.msk [vmem:[#allocation4] sm:$0x3] %vm1409, %v1418
    %1422 = vrot.lane.b32.xlu0 %v1404, 96
    %v1423 = vpop.permute.xlu0 %1422
    %1425 = vst.msk [vmem:[#allocation5] sm:$0x3] %vm1409, %v1423
    // Predicated region
    $region46: #{simple_lstm_forward.1} parent=1 // pred_check
      %p1426 = pneg %p37
    $region47: #{simple_lstm_forward.1} parent=1 // pred_check_branch
      %1428 = sbr.rel (%p1426) target = $region49
    $region48: #{simple_lstm_forward.1} parent=1 // pred_region
      %v1429 = vpack.c.bf16 %v1403, %v1403
      %v1430 = vld [vmem:[%s8] sm:$0xf]
      %v1431 = vld [vmem:[%s8 + $0x4] sm:$0xf]
      %v1432 = vld [vmem:[%s8 + $0x8] sm:$0xf]
      %v1433 = vld [vmem:[%s8 + $0xc] sm:$0xf]
      %v1434 = vld [vmem:[%s9] sm:$0x1]
      %v1436 = vperm.slane %v1434, 0
      %1439 = vrot.lane.b32.xlu0 %v1429, 64
      %v1440 = vpop.permute.xlu0 %1439
      %v1445 = vunpack.c.l.b16 %v1430
      %v1446 = vunpack.c.l.b16 %v1431
      %v1447 = vunpack.c.l.b16 %v1432
      %v1448 = vunpack.c.l.b16 %v1433
      %v1449 = vpack.c.b16 %v1446, %v1445
      %v1450 = vpack.c.b16 %v1448, %v1447
      %v1454 = vsel %vm91, %v1440, 0
      %1456 = vmatpush.bf16.msra.mxu0 0
      %1457 = vmatpush.bf16.msra.mxu0 0
      %1458 = vmatpush.bf16.msra.mxu0 0
      %1459 = vmatpush.bf16.msra.mxu0 0
      %1460 = vmatpush.bf16.msra.mxu0 0
      %1461 = vmatpush.bf16.msra.mxu0 0
      %1462 = vmatpush.bf16.msra.mxu0 %v1450
      %1463 = vmatpush.bf16.msra.mxu0 %v1449
      %1464 = vmatmul.bf16.gmra.mxu0 %v1454
      %v1465 = vpop.f32.mrf.mxu0
      %v1466 = vadd.f32 %v1436, %v1465
      %v1467 = vpop.f32.mrf.mxu0
      %1468 = vdwg.mxu0
      %1469 = vst [vmem:[#allocation6] sm:$0x3] %v1466
    $region49: #{simple_lstm_forward.1} parent=1 // pred_fallthru
      _
    // Predicated region
    $region50: #{simple_lstm_forward.1} parent=1 // pred_check
      _
    $region51: #{simple_lstm_forward.1} parent=1 // pred_check_branch
      %1471 = sbr.rel (0) target = $region53
    $region52: #{simple_lstm_forward.1} parent=1 // pred_region
      %1473 = vsyncadd [#allocation7], 0
      %s1475 = sshll.u32 [#allocation6], 4
      %s1476 = int_to_ptr.vmem [resolvable:$true] %s1475
      %s1477 = sshll.u32 %s10, 4
      %s1478 = int_to_ptr.hbm [resolvable:$true] %s1477
      %1480 = dma.vmem_to_hbm [thread:$0]  %s1476, 32, %s1478, [#allocation7]
    $region53: #{simple_lstm_forward.1} parent=1 // pred_fallthru
      _
    // Predicated region
    $region54: #{simple_lstm_forward.1} parent=1 // pred_check
      _
    $region55: #{simple_lstm_forward.1} parent=1 // pred_check_branch
      %1482 = sbr.rel (0) target = $region57
    $region56: #{simple_lstm_forward.1} parent=1 // pred_region
      %1484 = dma.done [#allocation7], 32
    $region57: #{simple_lstm_forward.1} parent=1 // pred_fallthru
      _
    %1485 = vsyncpa [#allocation7], 1

</llo_original>
